<compile_context>
chip_gen: v7x
topology: tpu7x:2x2x1
jax: 0.10.0
libtpu: 0.0.40
codegen_flags: <defaults>
</compile_context>

<pallas_src>
import math

import jax
import jax.numpy as jnp
from jax.experimental import pallas as pl
from jax.experimental.pallas import tpu as pltpu


# ----------------------------------------------------------------------------
# Host-side helpers (parameter prep / shape logic)
# ----------------------------------------------------------------------------
def _fold_bn(gamma, beta, mean, var, eps=1e-5):
    scale = gamma / jnp.sqrt(var + eps)
    bias = beta - mean * scale
    return scale, bias


def _get_shape_with_stride(in_shape, stride):
    # xnn.utils.get_shape_with_stride equivalent
    return [in_shape[0], in_shape[1],
            math.ceil(in_shape[2] / stride), math.ceil(in_shape[3] / stride)]


def _find_blob_index(x_shapes, shape_s):
    # xnn.utils.get_blob_from_list equivalent (operates on shapes only)
    for i, s in enumerate(x_shapes):
        if tuple(s) == tuple(shape_s):
            return i
    raise ValueError(f"no blob in x_list with shape {tuple(shape_s)}")


# ----------------------------------------------------------------------------
# Fused Pallas kernel: all pyramid levels for one batch element per grid step
# ----------------------------------------------------------------------------
_REFS_PER_LEVEL = 5   # xs_pad, dw_w, dw_b, pw_w(bf16), pw_b


def _make_pyramid_kernel(level_meta):
    """level_meta: tuple of (Cp, Cs, Cin, Cout, h0, w0, H, W, p, Hp, Wp, shifts)."""
    n_lv = len(level_meta)

    def kernel(*refs):
        x_top_ref = refs[0]
        lvl_refs = [refs[1 + i * _REFS_PER_LEVEL: 1 + (i + 1) * _REFS_PER_LEVEL]
                    for i in range(n_lv)]
        out_refs = refs[1 + n_lv * _REFS_PER_LEVEL:]

        prev = x_top_ref[0]                                   # (Cp0, h0*w0)
        for i, (Cp, Cs, Cin, Cout, h0, w0, H, W, p, Hp, Wp, shifts) \
                in enumerate(level_meta):
            xs_ref, dww_ref, dwb_ref, pww_ref, pwb_ref = lvl_refs[i]
            span = (H - 1) * Wp + W          # accumulation span (valid + halo gaps)
            c0 = p * Wp + p                  # flat index of output pixel (0, 0)

            # ---- 2x nearest upsample of `prev` + zero halo: lane ops only ----
            pieces = []
            if p:
                pieces.append(jnp.zeros((Cp, p * Wp), jnp.float32))   # top halo rows
                zlr = jnp.zeros((Cp, p), jnp.float32)                 # left/right halo
            for r in range(h0):
                row = prev[:, r * w0:(r + 1) * w0]                    # (Cp, w0)
                rp = [zlr] if p else []
                for j in range(w0):
                    col = row[:, j:j + 1]
                    rp.append(col)
                    rp.append(col)                                    # column dup
                if p:
                    rp.append(zlr)
                rowd = jnp.concatenate(rp, axis=1)                    # (Cp, Wp)
                pieces.append(rowd)
                pieces.append(rowd)                                   # row dup
            if p:
                pieces.append(jnp.zeros((Cp, p * Wp), jnp.float32))   # bottom halo
            up_pad = jnp.concatenate(pieces, axis=1)                  # (Cp, Hp*Wp)

            # ---- implicit CatBlock: branches stacked along sublanes ---------
            xcat = jnp.concatenate([up_pad, xs_ref[0]], axis=0)       # (Cin, Hp*Wp)

            # ---- depthwise k x k 'same' conv: shifted slice + FMA per tap ---
            # (halo layout: no per-tap masks; slices stay in-bounds by design)
            wdw = dww_ref[...]                                        # (Cin, k*k)
            acc = None
            for t, s in enumerate(shifts):
                tap = xcat[:, c0 + s: c0 + s + span]                  # static slice
                term = tap * wdw[:, t:t + 1]
                acc = term if acc is None else acc + term
            act = jnp.maximum(acc + dwb_ref[...], 0.0)                # (Cin, span)

            # ---- drop the inter-row halo lanes -> dense (Cin, H*W) ----------
            act_d = jnp.concatenate(
                [act[:, h * Wp: h * Wp + W] for h in range(H)], axis=1)

            # ---- pointwise 1x1: one bf16 MXU dot per level, f32 accumulate --
            y = jnp.dot(pww_ref[...], act_d.astype(jnp.bfloat16),
                        preferred_element_type=jnp.float32)
            y = jnp.maximum(y + pwb_ref[...], 0.0)                    # (Cout, H*W)

            out_refs[i][0] = y             # single contiguous NCHW-flat store
            prev = y                       # feeds the next level in VMEM/vregs

    return kernel


# ----------------------------------------------------------------------------
# Module wrapper
# ----------------------------------------------------------------------------
class UNetEdgeAILitePyramidPallas:
    """JAX/Pallas port of UNetEdgeAILitePyramid (see header for fixed config)."""

    def __init__(self, current_channels, minimum_channels, shortcut_strides,
                 shortcut_channels, kernel_size_smooth, key):
        self.shortcut_strides = tuple(shortcut_strides)
        self.shortcut_channels = tuple(shortcut_channels)
        self.k = int(kernel_size_smooth)
        self.levels = []
        cur = current_channels
        for feat in self.shortcut_channels:
            cin = cur + feat
            cout = max(minimum_channels, feat)
            key, k1, k2 = jax.random.split(key, 3)
            # depthwise weight: PyTorch (Cin,1,k,k) laid out here as (Cin, k*k)
            dw_w = jax.random.normal(k1, (cin, self.k * self.k), jnp.float32) * 0.1
            # pointwise weight: PyTorch (Cout,Cin,1,1) laid out here as (Cout, Cin)
            pw_w = jax.random.normal(k2, (cout, cin), jnp.float32) * 0.1
            # BatchNorm (eval mode, default init): scale folded into conv weights.
            dw_s, dw_b = _fold_bn(jnp.ones((cin,)), jnp.zeros((cin,)),
                                  jnp.zeros((cin,)), jnp.ones((cin,)))
            pw_s, pw_b = _fold_bn(jnp.ones((cout,)), jnp.zeros((cout,)),
                                  jnp.zeros((cout,)), jnp.ones((cout,)))
            dw_wf = dw_w * dw_s[:, None]
            pw_wf = pw_w * pw_s[:, None]
            self.levels.append(dict(
                Cp=cur, Cs=feat, Cin=cin, Cout=cout,
                dw_w=dw_wf, dw_b=dw_b.reshape(cin, 1),
                pw_w=pw_wf, pw_w_bf16=pw_wf.astype(jnp.bfloat16),
                pw_b=pw_b.reshape(cout, 1)))
            cur = cout
        self._plan_cache = {}

    # ---- build (and cache) the fused kernel + specs for one shape set -------
    def _build_plan(self, in_shape, x_shapes):
        N, c_top = x_shapes[-1][0], x_shapes[-1][1]
        h, w = x_shapes[-1][2], x_shapes[-1][3]
        h0_top, w0_top = h, w
        assert c_top == self.levels[0]["Cp"], "x_list[-1] channel count mismatch"

        k = self.k
        p = k // 2
        xs_idx, level_meta = [], []
        for i, (s_stride, s_chan) in enumerate(
                zip(self.shortcut_strides, self.shortcut_channels)):
            lvl = self.levels[i]
            shape_s = _get_shape_with_stride(in_shape, s_stride)
            shape_s[1] = s_chan
            xs_idx.append(_find_blob_index(x_shapes, shape_s))
            # UpsampleWith(..., 'upsample', 'nearest'): upstride=2 hardcoded.
            H, W = 2 * h, 2 * w
            assert (H, W) == (shape_s[2], shape_s[3]), \
                "upsampled feature does not match shortcut spatial size"
            Hp, Wp = H + 2 * p, W + 2 * p
            shifts = tuple((di - p) * Wp + (dj - p)
                           for di in range(k) for dj in range(k))
            level_meta.append((lvl["Cp"], lvl["Cs"], lvl["Cin"], lvl["Cout"],
                               h, w, H, W, p, Hp, Wp, shifts))
            h, w = H, W
        level_meta = tuple(level_meta)

        kernel = _make_pyramid_kernel(level_meta)

        out_shape = tuple(
            jax.ShapeDtypeStruct((N, m[3], m[6] * m[7]), jnp.float32)
            for m in level_meta)
        out_specs = tuple(
            pl.BlockSpec((1, m[3], m[6] * m[7]), lambda n: (n, 0, 0))
            for m in level_meta)

        in_specs = [pl.BlockSpec((1, c_top, h0_top * w0_top), lambda n: (n, 0, 0))]
        for (Cp, Cs, Cin, Cout, h0, w0, H, W, pp, Hp, Wp, shifts) in level_meta:
            in_specs += [
                pl.BlockSpec((1, Cs, Hp * Wp), lambda n: (n, 0, 0)),   # xs (padded)
                pl.BlockSpec((Cin, k * k), lambda n: (0, 0)),          # dw weights
                pl.BlockSpec((Cin, 1), lambda n: (0, 0)),              # dw bias
                pl.BlockSpec((Cout, Cin), lambda n: (0, 0)),           # pw weights
                pl.BlockSpec((Cout, 1), lambda n: (0, 0)),             # pw bias
            ]

        # Advisory cost estimate (keeps XLA scheduling sane on small kernels).
        flops = 0
        bytes_accessed = 4 * N * c_top * h0_top * w0_top
        for (Cp, Cs, Cin, Cout, h0, w0, H, W, pp, Hp, Wp, shifts) in level_meta:
            span = (H - 1) * Wp + W
            flops += N * (2 * Cin * k * k * span + 2 * Cout * Cin * H * W)
            bytes_accessed += (4 * N * (Cs * Hp * Wp + Cout * H * W)
                               + 4 * (Cin * (k * k + 1) + Cout) + 2 * Cout * Cin)

        call_kwargs = {}
        if hasattr(pl, "CostEstimate"):
            call_kwargs["cost_estimate"] = pl.CostEstimate(
                flops=int(flops), transcendentals=0,
                bytes_accessed=int(bytes_accessed))
        cp_cls = getattr(pltpu, "CompilerParams", None)
        if cp_cls is None:
            cp_cls = getattr(pltpu, "TPUCompilerParams", None)
        if cp_cls is not None:
            call_kwargs["compiler_params"] = cp_cls(
                dimension_semantics=("parallel",),        # batch across TCs (v7x)
                vmem_limit_bytes=48 * 1024 * 1024)

        call = pl.pallas_call(
            kernel, out_shape=out_shape, grid=(N,),
            in_specs=in_specs, out_specs=out_specs, **call_kwargs)

        levels = self.levels

        def forward(x_top, *xs_list):
            # Wrapper-side work: free NCHW <-> flat reshapes plus one small
            # jnp.pad per shortcut (zero halo for the 'same' depthwise conv).
            args = [x_top.reshape(N, c_top, h0_top * w0_top).astype(jnp.float32)]
            for i, (Cp, Cs, Cin, Cout, h0, w0, H, W, pp, Hp, Wp, shifts) \
                    in enumerate(level_meta):
                xs = xs_list[i].astype(jnp.float32)
                xs_pad = jnp.pad(xs, ((0, 0), (0, 0), (pp, pp), (pp, pp)))
                args += [xs_pad.reshape(N, Cs, Hp * Wp),
                         levels[i]["dw_w"], levels[i]["dw_b"],
                         levels[i]["pw_w_bf16"], levels[i]["pw_b"]]
            outs = call(*args)
            return tuple(
                o.reshape(N, level_meta[i][3], level_meta[i][6], level_meta[i][7])
                for i, o in enumerate(outs))

        return dict(xs_idx=tuple(xs_idx), fn=jax.jit(forward))

    def __call__(self, x_input, x_list):
        key = (tuple(x_input.shape), tuple(tuple(x.shape) for x in x_list))
        if key not in self._plan_cache:
            self._plan_cache[key] = self._build_plan(
                tuple(x_input.shape), [tuple(x.shape) for x in x_list])
        plan = self._plan_cache[key]
        x_top = x_list[-1]
        xs = [x_list[j] for j in plan["xs_idx"]]
        level_outs = plan["fn"](x_top, *xs)
        outputs = [x_top] + list(level_outs)  # smooth_convs[0] is None -> passthrough
        return outputs[::-1]


# ----------------------------------------------------------------------------
# Pure-JAX reference (numerical sanity check in the demo)
# ----------------------------------------------------------------------------
def _reference_forward(model, x_input, x_list):
    in_shape = x_input.shape
    x = x_list[-1]
    outputs = [x]
    for i, (s_stride, s_chan) in enumerate(
            zip(model.shortcut_strides, model.shortcut_channels)):
        shape_s = _get_shape_with_stride(in_shape, s_stride)
        shape_s[1] = s_chan
        x_s = x_list[_find_blob_index([xb.shape for xb in x_list], shape_s)]
        x = jnp.repeat(jnp.repeat(x, 2, axis=2), 2, axis=3)   # nearest 2x
        x = jnp.concatenate([x, x_s], axis=1)
        prm, k = model.levels[i], model.k
        cin = prm["Cin"]
        dw_w = prm["dw_w"].reshape(cin, 1, k, k)
        y = jax.lax.conv_general_dilated(
            x, dw_w, window_strides=(1, 1), padding="SAME",
            dimension_numbers=("NCHW", "OIHW", "NCHW"),
            feature_group_count=cin, precision=jax.lax.Precision.HIGHEST)
        y = jnp.maximum(y + prm["dw_b"].reshape(1, cin, 1, 1), 0.0)
        z = jnp.einsum("oc,nchw->nohw", prm["pw_w"], y, precision="highest")
        x = jnp.maximum(z + prm["pw_b"].reshape(1, -1, 1, 1), 0.0)
        outputs.append(x)
    return outputs[::-1]


# ----------------------------------------------------------------------------
# Demo
# ----------------------------------------------------------------------------
if __name__ == "__main__":
    key = jax.random.PRNGKey(0)
    key, kin, ks2, ks4, ks8, kp = jax.random.split(key, 6)

    N, H, W = 2, 16, 16
    x_input = jax.random.normal(kin, (N, 4, H, W), jnp.float32)          # NCHW
    x_list = [
        jax.random.normal(ks2, (N, 8, H // 2, W // 2), jnp.float32),     # stride 2
        jax.random.normal(ks4, (N, 16, H // 4, W // 4), jnp.float32),    # stride 4
        jax.random.normal(ks8, (N, 32, H // 8, W // 8), jnp.float32),    # stride 8
    ]

    model = UNetEdgeAILitePyramidPallas(
        current_channels=32, minimum_channels=16,
        shortcut_strides=(4, 2), shortcut_channels=(16, 8),
        kernel_size_smooth=3, key=kp)

    outs = model(x_input, x_list)
    outs = jax.block_until_ready(outs)

    assert tuple(outs[0].shape) == (N, 16, 8, 8)
    assert tuple(outs[1].shape) == (N, 16, 4, 4)
    assert tuple(outs[2].shape) == (N, 32, 2, 2)
    assert all(bool(jnp.all(jnp.isfinite(o))) for o in outs)

    # numerical sanity check against a pure-JAX reference
    ref_outs = jax.block_until_ready(_reference_forward(model, x_input, x_list))
    for got, want in zip(outs, ref_outs):
        assert got.shape == want.shape
        max_diff = float(jnp.max(jnp.abs(got - want)))
        assert max_diff < 5e-2, f"mismatch vs reference: max|diff|={max_diff}"

    print("KERNEL_OK")
</pallas_src>

<mosaic_0001>
module attributes {stable_mosaic.version = 11 : i64} {
  func.func @kernel(%arg0: i32, %arg1: memref<1x32x4xf32, #tpu.memory_space<vmem>>, %arg2: memref<1x16x36xf32, #tpu.memory_space<vmem>>, %arg3: memref<48x9xf32, #tpu.memory_space<vmem>>, %arg4: memref<48x1xf32, #tpu.memory_space<vmem>>, %arg5: memref<16x48xbf16, #tpu.memory_space<vmem>>, %arg6: memref<16x1xf32, #tpu.memory_space<vmem>>, %arg7: memref<1x8x100xf32, #tpu.memory_space<vmem>>, %arg8: memref<24x9xf32, #tpu.memory_space<vmem>>, %arg9: memref<24x1xf32, #tpu.memory_space<vmem>>, %arg10: memref<16x24xbf16, #tpu.memory_space<vmem>>, %arg11: memref<16x1xf32, #tpu.memory_space<vmem>>, %arg12: memref<1x16x16xf32, #tpu.memory_space<vmem>>, %arg13: memref<1x16x64xf32, #tpu.memory_space<vmem>>) attributes {dimension_semantics = [#tpu.dimension_semantics<parallel>], iteration_bounds = array<i64: 2>, scalar_prefetch = 0 : i64, scratch_operands = 0 : i64, tpu.core_type = #tpu.core_type<tc>, window_params = [{transform_indices = @transform_0, window_bounds = array<i64: 1, 32, 4>}, {transform_indices = @transform_1, window_bounds = array<i64: 1, 16, 36>}, {pipeline_mode = #tpu.pipeline_mode<synchronous>, transform_indices = @transform_2, window_bounds = array<i64: 48, 9>}, {pipeline_mode = #tpu.pipeline_mode<synchronous>, transform_indices = @transform_3, window_bounds = array<i64: 48, 1>}, {pipeline_mode = #tpu.pipeline_mode<synchronous>, transform_indices = @transform_4, window_bounds = array<i64: 16, 48>}, {pipeline_mode = #tpu.pipeline_mode<synchronous>, transform_indices = @transform_5, window_bounds = array<i64: 16, 1>}, {transform_indices = @transform_6, window_bounds = array<i64: 1, 8, 100>}, {pipeline_mode = #tpu.pipeline_mode<synchronous>, transform_indices = @transform_7, window_bounds = array<i64: 24, 9>}, {pipeline_mode = #tpu.pipeline_mode<synchronous>, transform_indices = @transform_8, window_bounds = array<i64: 24, 1>}, {pipeline_mode = #tpu.pipeline_mode<synchronous>, transform_indices = @transform_9, window_bounds = array<i64: 16, 24>}, {pipeline_mode = #tpu.pipeline_mode<synchronous>, transform_indices = @transform_10, window_bounds = array<i64: 16, 1>}, {transform_indices = @transform_11, window_bounds = array<i64: 1, 16, 16>}, {transform_indices = @transform_12, window_bounds = array<i64: 1, 16, 64>}]} {
    %c0 = arith.constant 0 : index
    %c0_0 = arith.constant 0 : index
    %c0_1 = arith.constant 0 : index
    %0 = vector.load %arg1[%c0, %c0_0, %c0_1] : memref<1x32x4xf32, #tpu.memory_space<vmem>>, vector<1x32x4xf32>
    %1 = vector.shape_cast %0 : vector<1x32x4xf32> to vector<32x4xf32>
    %cst = arith.constant 0.000000e+00 : f32
    %2 = vector.broadcast %cst : f32 to vector<32x6xf32>
    %cst_2 = arith.constant 0.000000e+00 : f32
    %3 = vector.broadcast %cst_2 : f32 to vector<32x1xf32>
    %4 = vector.extract_strided_slice %1 {offsets = [0, 0], sizes = [32, 2], strides = [1, 1]} : vector<32x4xf32> to vector<32x2xf32>
    %5 = vector.extract_strided_slice %4 {offsets = [0, 0], sizes = [32, 1], strides = [1, 1]} : vector<32x2xf32> to vector<32x1xf32>
    %6 = vector.extract_strided_slice %4 {offsets = [0, 1], sizes = [32, 1], strides = [1, 1]} : vector<32x2xf32> to vector<32x1xf32>
    %7 = tpu.concatenate %3, %5, %5, %6, %6, %3 in 1 : vector<32x1xf32>, vector<32x1xf32>, vector<32x1xf32>, vector<32x1xf32>, vector<32x1xf32>, vector<32x1xf32> -> vector<32x6xf32>
    %8 = vector.extract_strided_slice %1 {offsets = [0, 2], sizes = [32, 2], strides = [1, 1]} : vector<32x4xf32> to vector<32x2xf32>
    %9 = vector.extract_strided_slice %8 {offsets = [0, 0], sizes = [32, 1], strides = [1, 1]} : vector<32x2xf32> to vector<32x1xf32>
    %10 = vector.extract_strided_slice %8 {offsets = [0, 1], sizes = [32, 1], strides = [1, 1]} : vector<32x2xf32> to vector<32x1xf32>
    %11 = tpu.concatenate %3, %9, %9, %10, %10, %3 in 1 : vector<32x1xf32>, vector<32x1xf32>, vector<32x1xf32>, vector<32x1xf32>, vector<32x1xf32>, vector<32x1xf32> -> vector<32x6xf32>
    %cst_3 = arith.constant 0.000000e+00 : f32
    %12 = vector.broadcast %cst_3 : f32 to vector<32x6xf32>
    %13 = tpu.concatenate %2, %7, %7, %11, %11, %12 in 1 : vector<32x6xf32>, vector<32x6xf32>, vector<32x6xf32>, vector<32x6xf32>, vector<32x6xf32>, vector<32x6xf32> -> vector<32x36xf32>
    %c0_4 = arith.constant 0 : index
    %c0_5 = arith.constant 0 : index
    %c0_6 = arith.constant 0 : index
    %14 = vector.load %arg2[%c0_4, %c0_5, %c0_6] : memref<1x16x36xf32, #tpu.memory_space<vmem>>, vector<1x16x36xf32>
    %15 = vector.shape_cast %14 : vector<1x16x36xf32> to vector<16x36xf32>
    %16 = tpu.concatenate %13, %15 in 0 : vector<32x36xf32>, vector<16x36xf32> -> vector<48x36xf32>
    %c0_7 = arith.constant 0 : index
    %c0_8 = arith.constant 0 : index
    %17 = vector.load %arg3[%c0_7, %c0_8] : memref<48x9xf32, #tpu.memory_space<vmem>>, vector<48x9xf32>
    %18 = vector.extract_strided_slice %16 {offsets = [0, 0], sizes = [48, 22], strides = [1, 1]} : vector<48x36xf32> to vector<48x22xf32>
    %19 = vector.extract_strided_slice %17 {offsets = [0, 0], sizes = [48, 1], strides = [1, 1]} : vector<48x9xf32> to vector<48x1xf32>
    %20 = vector.broadcast %19 : vector<48x1xf32> to vector<48x22xf32>
    %21 = arith.mulf %18, %20 : vector<48x22xf32>
    %22 = vector.extract_strided_slice %16 {offsets = [0, 1], sizes = [48, 22], strides = [1, 1]} : vector<48x36xf32> to vector<48x22xf32>
    %23 = vector.extract_strided_slice %17 {offsets = [0, 1], sizes = [48, 1], strides = [1, 1]} : vector<48x9xf32> to vector<48x1xf32>
    %24 = vector.broadcast %23 : vector<48x1xf32> to vector<48x22xf32>
    %25 = arith.mulf %22, %24 : vector<48x22xf32>
    %26 = arith.addf %21, %25 : vector<48x22xf32>
    %27 = vector.extract_strided_slice %16 {offsets = [0, 2], sizes = [48, 22], strides = [1, 1]} : vector<48x36xf32> to vector<48x22xf32>
    %28 = vector.extract_strided_slice %17 {offsets = [0, 2], sizes = [48, 1], strides = [1, 1]} : vector<48x9xf32> to vector<48x1xf32>
    %29 = vector.broadcast %28 : vector<48x1xf32> to vector<48x22xf32>
    %30 = arith.mulf %27, %29 : vector<48x22xf32>
    %31 = arith.addf %26, %30 : vector<48x22xf32>
    %32 = vector.extract_strided_slice %16 {offsets = [0, 6], sizes = [48, 22], strides = [1, 1]} : vector<48x36xf32> to vector<48x22xf32>
    %33 = vector.extract_strided_slice %17 {offsets = [0, 3], sizes = [48, 1], strides = [1, 1]} : vector<48x9xf32> to vector<48x1xf32>
    %34 = vector.broadcast %33 : vector<48x1xf32> to vector<48x22xf32>
    %35 = arith.mulf %32, %34 : vector<48x22xf32>
    %36 = arith.addf %31, %35 : vector<48x22xf32>
    %37 = vector.extract_strided_slice %16 {offsets = [0, 7], sizes = [48, 22], strides = [1, 1]} : vector<48x36xf32> to vector<48x22xf32>
    %38 = vector.extract_strided_slice %17 {offsets = [0, 4], sizes = [48, 1], strides = [1, 1]} : vector<48x9xf32> to vector<48x1xf32>
    %39 = vector.broadcast %38 : vector<48x1xf32> to vector<48x22xf32>
    %40 = arith.mulf %37, %39 : vector<48x22xf32>
    %41 = arith.addf %36, %40 : vector<48x22xf32>
    %42 = vector.extract_strided_slice %16 {offsets = [0, 8], sizes = [48, 22], strides = [1, 1]} : vector<48x36xf32> to vector<48x22xf32>
    %43 = vector.extract_strided_slice %17 {offsets = [0, 5], sizes = [48, 1], strides = [1, 1]} : vector<48x9xf32> to vector<48x1xf32>
    %44 = vector.broadcast %43 : vector<48x1xf32> to vector<48x22xf32>
    %45 = arith.mulf %42, %44 : vector<48x22xf32>
    %46 = arith.addf %41, %45 : vector<48x22xf32>
    %47 = vector.extract_strided_slice %16 {offsets = [0, 12], sizes = [48, 22], strides = [1, 1]} : vector<48x36xf32> to vector<48x22xf32>
    %48 = vector.extract_strided_slice %17 {offsets = [0, 6], sizes = [48, 1], strides = [1, 1]} : vector<48x9xf32> to vector<48x1xf32>
    %49 = vector.broadcast %48 : vector<48x1xf32> to vector<48x22xf32>
    %50 = arith.mulf %47, %49 : vector<48x22xf32>
    %51 = arith.addf %46, %50 : vector<48x22xf32>
    %52 = vector.extract_strided_slice %16 {offsets = [0, 13], sizes = [48, 22], strides = [1, 1]} : vector<48x36xf32> to vector<48x22xf32>
    %53 = vector.extract_strided_slice %17 {offsets = [0, 7], sizes = [48, 1], strides = [1, 1]} : vector<48x9xf32> to vector<48x1xf32>
    %54 = vector.broadcast %53 : vector<48x1xf32> to vector<48x22xf32>
    %55 = arith.mulf %52, %54 : vector<48x22xf32>
    %56 = arith.addf %51, %55 : vector<48x22xf32>
    %57 = vector.extract_strided_slice %16 {offsets = [0, 14], sizes = [48, 22], strides = [1, 1]} : vector<48x36xf32> to vector<48x22xf32>
    %58 = vector.extract_strided_slice %17 {offsets = [0, 8], sizes = [48, 1], strides = [1, 1]} : vector<48x9xf32> to vector<48x1xf32>
    %59 = vector.broadcast %58 : vector<48x1xf32> to vector<48x22xf32>
    %60 = arith.mulf %57, %59 : vector<48x22xf32>
    %61 = arith.addf %56, %60 : vector<48x22xf32>
    %c0_9 = arith.constant 0 : index
    %c0_10 = arith.constant 0 : index
    %62 = vector.load %arg4[%c0_9, %c0_10] : memref<48x1xf32, #tpu.memory_space<vmem>>, vector<48x1xf32>
    %63 = vector.broadcast %62 : vector<48x1xf32> to vector<48x22xf32>
    %64 = arith.addf %61, %63 : vector<48x22xf32>
    %cst_11 = arith.constant 0.000000e+00 : f32
    %65 = vector.broadcast %cst_11 : f32 to vector<48x22xf32>
    %66 = arith.maximumf %64, %65 : vector<48x22xf32>
    %67 = vector.extract_strided_slice %66 {offsets = [0, 0], sizes = [48, 4], strides = [1, 1]} : vector<48x22xf32> to vector<48x4xf32>
    %68 = vector.extract_strided_slice %66 {offsets = [0, 6], sizes = [48, 4], strides = [1, 1]} : vector<48x22xf32> to vector<48x4xf32>
    %69 = vector.extract_strided_slice %66 {offsets = [0, 12], sizes = [48, 4], strides = [1, 1]} : vector<48x22xf32> to vector<48x4xf32>
    %70 = vector.extract_strided_slice %66 {offsets = [0, 18], sizes = [48, 4], strides = [1, 1]} : vector<48x22xf32> to vector<48x4xf32>
    %71 = tpu.concatenate %67, %68, %69, %70 in 1 : vector<48x4xf32>, vector<48x4xf32>, vector<48x4xf32>, vector<48x4xf32> -> vector<48x16xf32>
    %c0_12 = arith.constant 0 : index
    %c0_13 = arith.constant 0 : index
    %72 = vector.load %arg5[%c0_12, %c0_13] : memref<16x48xbf16, #tpu.memory_space<vmem>>, vector<16x48xbf16>
    %73 = arith.truncf %71 : vector<48x16xf32> to vector<48x16xbf16>
    %cst_14 = arith.constant dense<0.000000e+00> : vector<16x16xf32>
    %74 = tpu.matmul %72, %73, %cst_14 {dimension_numbers = #tpu.dot_dimension_numbers<[1], [0], [0], [1], [0, 0, 1, 1], [], []>} : vector<16x48xbf16>, vector<48x16xbf16>, vector<16x16xf32> -> vector<16x16xf32>
    %c0_15 = arith.constant 0 : index
    %c0_16 = arith.constant 0 : index
    %75 = vector.load %arg6[%c0_15, %c0_16] : memref<16x1xf32, #tpu.memory_space<vmem>>, vector<16x1xf32>
    %76 = vector.broadcast %75 : vector<16x1xf32> to vector<16x16xf32>
    %77 = arith.addf %74, %76 : vector<16x16xf32>
    %cst_17 = arith.constant 0.000000e+00 : f32
    %78 = vector.broadcast %cst_17 : f32 to vector<16x16xf32>
    %79 = arith.maximumf %77, %78 : vector<16x16xf32>
    %c0_18 = arith.constant 0 : index
    %c0_19 = arith.constant 0 : index
    %c0_20 = arith.constant 0 : index
    %80 = vector.load %arg12[%c0_18, %c0_19, %c0_20] : memref<1x16x16xf32, #tpu.memory_space<vmem>>, vector<1x16x16xf32>
    %81 = vector.shape_cast %80 : vector<1x16x16xf32> to vector<16x16xf32>
    %82 = vector.shape_cast %79 : vector<16x16xf32> to vector<1x16x16xf32>
    tpu.vector_store %arg12[%c0_18, %c0_19, %c0_20], %82 {strides = array<i32>} : memref<1x16x16xf32, #tpu.memory_space<vmem>>, vector<1x16x16xf32>,
    %cst_21 = arith.constant 0.000000e+00 : f32
    %83 = vector.broadcast %cst_21 : f32 to vector<16x10xf32>
    %cst_22 = arith.constant 0.000000e+00 : f32
    %84 = vector.broadcast %cst_22 : f32 to vector<16x1xf32>
    %85 = vector.extract_strided_slice %79 {offsets = [0, 0], sizes = [16, 4], strides = [1, 1]} : vector<16x16xf32> to vector<16x4xf32>
    %86 = vector.extract_strided_slice %85 {offsets = [0, 0], sizes = [16, 1], strides = [1, 1]} : vector<16x4xf32> to vector<16x1xf32>
    %87 = vector.extract_strided_slice %85 {offsets = [0, 1], sizes = [16, 1], strides = [1, 1]} : vector<16x4xf32> to vector<16x1xf32>
    %88 = vector.extract_strided_slice %85 {offsets = [0, 2], sizes = [16, 1], strides = [1, 1]} : vector<16x4xf32> to vector<16x1xf32>
    %89 = vector.extract_strided_slice %85 {offsets = [0, 3], sizes = [16, 1], strides = [1, 1]} : vector<16x4xf32> to vector<16x1xf32>
    %90 = tpu.concatenate %84, %86, %86, %87, %87, %88, %88, %89, %89, %84 in 1 : vector<16x1xf32>, vector<16x1xf32>, vector<16x1xf32>, vector<16x1xf32>, vector<16x1xf32>, vector<16x1xf32>, vector<16x1xf32>, vector<16x1xf32>, vector<16x1xf32>, vector<16x1xf32> -> vector<16x10xf32>
    %91 = vector.extract_strided_slice %79 {offsets = [0, 4], sizes = [16, 4], strides = [1, 1]} : vector<16x16xf32> to vector<16x4xf32>
    %92 = vector.extract_strided_slice %91 {offsets = [0, 0], sizes = [16, 1], strides = [1, 1]} : vector<16x4xf32> to vector<16x1xf32>
    %93 = vector.extract_strided_slice %91 {offsets = [0, 1], sizes = [16, 1], strides = [1, 1]} : vector<16x4xf32> to vector<16x1xf32>
    %94 = vector.extract_strided_slice %91 {offsets = [0, 2], sizes = [16, 1], strides = [1, 1]} : vector<16x4xf32> to vector<16x1xf32>
    %95 = vector.extract_strided_slice %91 {offsets = [0, 3], sizes = [16, 1], strides = [1, 1]} : vector<16x4xf32> to vector<16x1xf32>
    %96 = tpu.concatenate %84, %92, %92, %93, %93, %94, %94, %95, %95, %84 in 1 : vector<16x1xf32>, vector<16x1xf32>, vector<16x1xf32>, vector<16x1xf32>, vector<16x1xf32>, vector<16x1xf32>, vector<16x1xf32>, vector<16x1xf32>, vector<16x1xf32>, vector<16x1xf32> -> vector<16x10xf32>
    %97 = vector.extract_strided_slice %79 {offsets = [0, 8], sizes = [16, 4], strides = [1, 1]} : vector<16x16xf32> to vector<16x4xf32>
    %98 = vector.extract_strided_slice %97 {offsets = [0, 0], sizes = [16, 1], strides = [1, 1]} : vector<16x4xf32> to vector<16x1xf32>
    %99 = vector.extract_strided_slice %97 {offsets = [0, 1], sizes = [16, 1], strides = [1, 1]} : vector<16x4xf32> to vector<16x1xf32>
    %100 = vector.extract_strided_slice %97 {offsets = [0, 2], sizes = [16, 1], strides = [1, 1]} : vector<16x4xf32> to vector<16x1xf32>
    %101 = vector.extract_strided_slice %97 {offsets = [0, 3], sizes = [16, 1], strides = [1, 1]} : vector<16x4xf32> to vector<16x1xf32>
    %102 = tpu.concatenate %84, %98, %98, %99, %99, %100, %100, %101, %101, %84 in 1 : vector<16x1xf32>, vector<16x1xf32>, vector<16x1xf32>, vector<16x1xf32>, vector<16x1xf32>, vector<16x1xf32>, vector<16x1xf32>, vector<16x1xf32>, vector<16x1xf32>, vector<16x1xf32> -> vector<16x10xf32>
    %103 = vector.extract_strided_slice %79 {offsets = [0, 12], sizes = [16, 4], strides = [1, 1]} : vector<16x16xf32> to vector<16x4xf32>
    %104 = vector.extract_strided_slice %103 {offsets = [0, 0], sizes = [16, 1], strides = [1, 1]} : vector<16x4xf32> to vector<16x1xf32>
    %105 = vector.extract_strided_slice %103 {offsets = [0, 1], sizes = [16, 1], strides = [1, 1]} : vector<16x4xf32> to vector<16x1xf32>
    %106 = vector.extract_strided_slice %103 {offsets = [0, 2], sizes = [16, 1], strides = [1, 1]} : vector<16x4xf32> to vector<16x1xf32>
    %107 = vector.extract_strided_slice %103 {offsets = [0, 3], sizes = [16, 1], strides = [1, 1]} : vector<16x4xf32> to vector<16x1xf32>
    %108 = tpu.concatenate %84, %104, %104, %105, %105, %106, %106, %107, %107, %84 in 1 : vector<16x1xf32>, vector<16x1xf32>, vector<16x1xf32>, vector<16x1xf32>, vector<16x1xf32>, vector<16x1xf32>, vector<16x1xf32>, vector<16x1xf32>, vector<16x1xf32>, vector<16x1xf32> -> vector<16x10xf32>
    %cst_23 = arith.constant 0.000000e+00 : f32
    %109 = vector.broadcast %cst_23 : f32 to vector<16x10xf32>
    %110 = tpu.concatenate %83, %90, %90, %96, %96, %102, %102, %108, %108, %109 in 1 : vector<16x10xf32>, vector<16x10xf32>, vector<16x10xf32>, vector<16x10xf32>, vector<16x10xf32>, vector<16x10xf32>, vector<16x10xf32>, vector<16x10xf32>, vector<16x10xf32>, vector<16x10xf32> -> vector<16x100xf32>
    %c0_24 = arith.constant 0 : index
    %c0_25 = arith.constant 0 : index
    %c0_26 = arith.constant 0 : index
    %111 = vector.load %arg7[%c0_24, %c0_25, %c0_26] : memref<1x8x100xf32, #tpu.memory_space<vmem>>, vector<1x8x100xf32>
    %112 = vector.shape_cast %111 : vector<1x8x100xf32> to vector<8x100xf32>
    %113 = tpu.concatenate %110, %112 in 0 : vector<16x100xf32>, vector<8x100xf32> -> vector<24x100xf32>
    %c0_27 = arith.constant 0 : index
    %c0_28 = arith.constant 0 : index
    %114 = vector.load %arg8[%c0_27, %c0_28] : memref<24x9xf32, #tpu.memory_space<vmem>>, vector<24x9xf32>
    %115 = vector.extract_strided_slice %113 {offsets = [0, 0], sizes = [24, 78], strides = [1, 1]} : vector<24x100xf32> to vector<24x78xf32>
    %116 = vector.extract_strided_slice %114 {offsets = [0, 0], sizes = [24, 1], strides = [1, 1]} : vector<24x9xf32> to vector<24x1xf32>
    %117 = vector.broadcast %116 : vector<24x1xf32> to vector<24x78xf32>
    %118 = arith.mulf %115, %117 : vector<24x78xf32>
    %119 = vector.extract_strided_slice %113 {offsets = [0, 1], sizes = [24, 78], strides = [1, 1]} : vector<24x100xf32> to vector<24x78xf32>
    %120 = vector.extract_strided_slice %114 {offsets = [0, 1], sizes = [24, 1], strides = [1, 1]} : vector<24x9xf32> to vector<24x1xf32>
    %121 = vector.broadcast %120 : vector<24x1xf32> to vector<24x78xf32>
    %122 = arith.mulf %119, %121 : vector<24x78xf32>
    %123 = arith.addf %118, %122 : vector<24x78xf32>
    %124 = vector.extract_strided_slice %113 {offsets = [0, 2], sizes = [24, 78], strides = [1, 1]} : vector<24x100xf32> to vector<24x78xf32>
    %125 = vector.extract_strided_slice %114 {offsets = [0, 2], sizes = [24, 1], strides = [1, 1]} : vector<24x9xf32> to vector<24x1xf32>
    %126 = vector.broadcast %125 : vector<24x1xf32> to vector<24x78xf32>
    %127 = arith.mulf %124, %126 : vector<24x78xf32>
    %128 = arith.addf %123, %127 : vector<24x78xf32>
    %129 = vector.extract_strided_slice %113 {offsets = [0, 10], sizes = [24, 78], strides = [1, 1]} : vector<24x100xf32> to vector<24x78xf32>
    %130 = vector.extract_strided_slice %114 {offsets = [0, 3], sizes = [24, 1], strides = [1, 1]} : vector<24x9xf32> to vector<24x1xf32>
    %131 = vector.broadcast %130 : vector<24x1xf32> to vector<24x78xf32>
    %132 = arith.mulf %129, %131 : vector<24x78xf32>
    %133 = arith.addf %128, %132 : vector<24x78xf32>
    %134 = vector.extract_strided_slice %113 {offsets = [0, 11], sizes = [24, 78], strides = [1, 1]} : vector<24x100xf32> to vector<24x78xf32>
    %135 = vector.extract_strided_slice %114 {offsets = [0, 4], sizes = [24, 1], strides = [1, 1]} : vector<24x9xf32> to vector<24x1xf32>
    %136 = vector.broadcast %135 : vector<24x1xf32> to vector<24x78xf32>
    %137 = arith.mulf %134, %136 : vector<24x78xf32>
    %138 = arith.addf %133, %137 : vector<24x78xf32>
    %139 = vector.extract_strided_slice %113 {offsets = [0, 12], sizes = [24, 78], strides = [1, 1]} : vector<24x100xf32> to vector<24x78xf32>
    %140 = vector.extract_strided_slice %114 {offsets = [0, 5], sizes = [24, 1], strides = [1, 1]} : vector<24x9xf32> to vector<24x1xf32>
    %141 = vector.broadcast %140 : vector<24x1xf32> to vector<24x78xf32>
    %142 = arith.mulf %139, %141 : vector<24x78xf32>
    %143 = arith.addf %138, %142 : vector<24x78xf32>
    %144 = vector.extract_strided_slice %113 {offsets = [0, 20], sizes = [24, 78], strides = [1, 1]} : vector<24x100xf32> to vector<24x78xf32>
    %145 = vector.extract_strided_slice %114 {offsets = [0, 6], sizes = [24, 1], strides = [1, 1]} : vector<24x9xf32> to vector<24x1xf32>
    %146 = vector.broadcast %145 : vector<24x1xf32> to vector<24x78xf32>
    %147 = arith.mulf %144, %146 : vector<24x78xf32>
    %148 = arith.addf %143, %147 : vector<24x78xf32>
    %149 = vector.extract_strided_slice %113 {offsets = [0, 21], sizes = [24, 78], strides = [1, 1]} : vector<24x100xf32> to vector<24x78xf32>
    %150 = vector.extract_strided_slice %114 {offsets = [0, 7], sizes = [24, 1], strides = [1, 1]} : vector<24x9xf32> to vector<24x1xf32>
    %151 = vector.broadcast %150 : vector<24x1xf32> to vector<24x78xf32>
    %152 = arith.mulf %149, %151 : vector<24x78xf32>
    %153 = arith.addf %148, %152 : vector<24x78xf32>
    %154 = vector.extract_strided_slice %113 {offsets = [0, 22], sizes = [24, 78], strides = [1, 1]} : vector<24x100xf32> to vector<24x78xf32>
    %155 = vector.extract_strided_slice %114 {offsets = [0, 8], sizes = [24, 1], strides = [1, 1]} : vector<24x9xf32> to vector<24x1xf32>
    %156 = vector.broadcast %155 : vector<24x1xf32> to vector<24x78xf32>
    %157 = arith.mulf %154, %156 : vector<24x78xf32>
    %158 = arith.addf %153, %157 : vector<24x78xf32>
    %c0_29 = arith.constant 0 : index
    %c0_30 = arith.constant 0 : index
    %159 = vector.load %arg9[%c0_29, %c0_30] : memref<24x1xf32, #tpu.memory_space<vmem>>, vector<24x1xf32>
    %160 = vector.broadcast %159 : vector<24x1xf32> to vector<24x78xf32>
    %161 = arith.addf %158, %160 : vector<24x78xf32>
    %cst_31 = arith.constant 0.000000e+00 : f32
    %162 = vector.broadcast %cst_31 : f32 to vector<24x78xf32>
    %163 = arith.maximumf %161, %162 : vector<24x78xf32>
    %164 = vector.extract_strided_slice %163 {offsets = [0, 0], sizes = [24, 8], strides = [1, 1]} : vector<24x78xf32> to vector<24x8xf32>
    %165 = vector.extract_strided_slice %163 {offsets = [0, 10], sizes = [24, 8], strides = [1, 1]} : vector<24x78xf32> to vector<24x8xf32>
    %166 = vector.extract_strided_slice %163 {offsets = [0, 20], sizes = [24, 8], strides = [1, 1]} : vector<24x78xf32> to vector<24x8xf32>
    %167 = vector.extract_strided_slice %163 {offsets = [0, 30], sizes = [24, 8], strides = [1, 1]} : vector<24x78xf32> to vector<24x8xf32>
    %168 = vector.extract_strided_slice %163 {offsets = [0, 40], sizes = [24, 8], strides = [1, 1]} : vector<24x78xf32> to vector<24x8xf32>
    %169 = vector.extract_strided_slice %163 {offsets = [0, 50], sizes = [24, 8], strides = [1, 1]} : vector<24x78xf32> to vector<24x8xf32>
    %170 = vector.extract_strided_slice %163 {offsets = [0, 60], sizes = [24, 8], strides = [1, 1]} : vector<24x78xf32> to vector<24x8xf32>
    %171 = vector.extract_strided_slice %163 {offsets = [0, 70], sizes = [24, 8], strides = [1, 1]} : vector<24x78xf32> to vector<24x8xf32>
    %172 = tpu.concatenate %164, %165, %166, %167, %168, %169, %170, %171 in 1 : vector<24x8xf32>, vector<24x8xf32>, vector<24x8xf32>, vector<24x8xf32>, vector<24x8xf32>, vector<24x8xf32>, vector<24x8xf32>, vector<24x8xf32> -> vector<24x64xf32>
    %c0_32 = arith.constant 0 : index
    %c0_33 = arith.constant 0 : index
    %173 = vector.load %arg10[%c0_32, %c0_33] : memref<16x24xbf16, #tpu.memory_space<vmem>>, vector<16x24xbf16>
    %174 = arith.truncf %172 : vector<24x64xf32> to vector<24x64xbf16>
    %cst_34 = arith.constant dense<0.000000e+00> : vector<16x64xf32>
    %175 = tpu.matmul %173, %174, %cst_34 {dimension_numbers = #tpu.dot_dimension_numbers<[1], [0], [0], [1], [0, 0, 1, 1], [], []>} : vector<16x24xbf16>, vector<24x64xbf16>, vector<16x64xf32> -> vector<16x64xf32>
    %c0_35 = arith.constant 0 : index
    %c0_36 = arith.constant 0 : index
    %176 = vector.load %arg11[%c0_35, %c0_36] : memref<16x1xf32, #tpu.memory_space<vmem>>, vector<16x1xf32>
    %177 = vector.broadcast %176 : vector<16x1xf32> to vector<16x64xf32>
    %178 = arith.addf %175, %177 : vector<16x64xf32>
    %cst_37 = arith.constant 0.000000e+00 : f32
    %179 = vector.broadcast %cst_37 : f32 to vector<16x64xf32>
    %180 = arith.maximumf %178, %179 : vector<16x64xf32>
    %c0_38 = arith.constant 0 : index
    %c0_39 = arith.constant 0 : index
    %c0_40 = arith.constant 0 : index
    %181 = vector.load %arg13[%c0_38, %c0_39, %c0_40] : memref<1x16x64xf32, #tpu.memory_space<vmem>>, vector<1x16x64xf32>
    %182 = vector.shape_cast %181 : vector<1x16x64xf32> to vector<16x64xf32>
    %183 = vector.shape_cast %180 : vector<16x64xf32> to vector<1x16x64xf32>
    tpu.vector_store %arg13[%c0_38, %c0_39, %c0_40], %183 {strides = array<i32>} : memref<1x16x64xf32, #tpu.memory_space<vmem>>, vector<1x16x64xf32>,
    return
  }
  func.func @transform_0(%arg0: i32) -> (i32, i32, i32) {
    %c0_i32 = arith.constant 0 : i32
    %c0_i32_0 = arith.constant 0 : i32
    %c0_i32_1 = arith.constant 0 : i32
    return %arg0, %c0_i32, %c0_i32_0 : i32, i32, i32
  }
  func.func @transform_1(%arg0: i32) -> (i32, i32, i32) {
    %c0_i32 = arith.constant 0 : i32
    %c0_i32_0 = arith.constant 0 : i32
    %c0_i32_1 = arith.constant 0 : i32
    return %arg0, %c0_i32, %c0_i32_0 : i32, i32, i32
  }
  func.func @transform_2(%arg0: i32) -> (i32, i32) {
    %c0_i32 = arith.constant 0 : i32
    %c0_i32_0 = arith.constant 0 : i32
    %c0_i32_1 = arith.constant 0 : i32
    return %c0_i32, %c0_i32_0 : i32, i32
  }
  func.func @transform_3(%arg0: i32) -> (i32, i32) {
    %c0_i32 = arith.constant 0 : i32
    %c0_i32_0 = arith.constant 0 : i32
    %c0_i32_1 = arith.constant 0 : i32
    return %c0_i32, %c0_i32_0 : i32, i32
  }
  func.func @transform_4(%arg0: i32) -> (i32, i32) {
    %c0_i32 = arith.constant 0 : i32
    %c0_i32_0 = arith.constant 0 : i32
    %c0_i32_1 = arith.constant 0 : i32
    return %c0_i32, %c0_i32_0 : i32, i32
  }
  func.func @transform_5(%arg0: i32) -> (i32, i32) {
    %c0_i32 = arith.constant 0 : i32
    %c0_i32_0 = arith.constant 0 : i32
    %c0_i32_1 = arith.constant 0 : i32
    return %c0_i32, %c0_i32_0 : i32, i32
  }
  func.func @transform_6(%arg0: i32) -> (i32, i32, i32) {
    %c0_i32 = arith.constant 0 : i32
    %c0_i32_0 = arith.constant 0 : i32
    %c0_i32_1 = arith.constant 0 : i32
    return %arg0, %c0_i32, %c0_i32_0 : i32, i32, i32
  }
  func.func @transform_7(%arg0: i32) -> (i32, i32) {
    %c0_i32 = arith.constant 0 : i32
    %c0_i32_0 = arith.constant 0 : i32
    %c0_i32_1 = arith.constant 0 : i32
    return %c0_i32, %c0_i32_0 : i32, i32
  }
  func.func @transform_8(%arg0: i32) -> (i32, i32) {
    %c0_i32 = arith.constant 0 : i32
    %c0_i32_0 = arith.constant 0 : i32
    %c0_i32_1 = arith.constant 0 : i32
    return %c0_i32, %c0_i32_0 : i32, i32
  }
  func.func @transform_9(%arg0: i32) -> (i32, i32) {
    %c0_i32 = arith.constant 0 : i32
    %c0_i32_0 = arith.constant 0 : i32
    %c0_i32_1 = arith.constant 0 : i32
    return %c0_i32, %c0_i32_0 : i32, i32
  }
  func.func @transform_10(%arg0: i32) -> (i32, i32) {
    %c0_i32 = arith.constant 0 : i32
    %c0_i32_0 = arith.constant 0 : i32
    %c0_i32_1 = arith.constant 0 : i32
    return %c0_i32, %c0_i32_0 : i32, i32
  }
  func.func @transform_11(%arg0: i32) -> (i32, i32, i32) {
    %c0_i32 = arith.constant 0 : i32
    %c0_i32_0 = arith.constant 0 : i32
    %c0_i32_1 = arith.constant 0 : i32
    return %arg0, %c0_i32, %c0_i32_0 : i32, i32, i32
  }
  func.func @transform_12(%arg0: i32) -> (i32, i32, i32) {
    %c0_i32 = arith.constant 0 : i32
    %c0_i32_0 = arith.constant 0 : i32
    %c0_i32_1 = arith.constant 0 : i32
    return %arg0, %c0_i32, %c0_i32_0 : i32, i32, i32
  }
}

</mosaic_0001>

<llo_original>
// kernel: forward.1
$region0: #{forward.1}
  #allocation0 [shape = 'u32[]', space=smem, size = 0x4, offset = 0x4, fixed_abs, tag = 'smem constant byte address 0x4 - core index']
  #allocation1 [shape = 'u32[144,128]{1,0:T(1,128)}', space=vmem, size = 0x12000, scoped, tag = 'internal scratch']
  %s0 = inlined_call_operand.vmem [shape: f32[2,32,4], index: 0, kind: input, shape index: {}]
  %s1 = inlined_call_operand.vmem [shape: f32[2,16,36], index: 1, kind: input, shape index: {}]
  %s2 = inlined_call_operand.vmem [shape: f32[48,9], index: 2, kind: input, shape index: {}]
  %s3 = inlined_call_operand.vmem [shape: f32[48,1], index: 3, kind: input, shape index: {}]
  %s4 = inlined_call_operand.vmem [shape: bf16[16,48], index: 4, kind: input, shape index: {}]
  %s5 = inlined_call_operand.vmem [shape: f32[16,1], index: 5, kind: input, shape index: {}, may-alias: {5,10}]
  %s6 = inlined_call_operand.vmem [shape: f32[2,8,100], index: 6, kind: input, shape index: {}]
  %s7 = inlined_call_operand.vmem [shape: f32[24,9], index: 7, kind: input, shape index: {}]
  %s8 = inlined_call_operand.vmem [shape: f32[24,1], index: 8, kind: input, shape index: {}]
  %s9 = inlined_call_operand.vmem [shape: bf16[16,24], index: 9, kind: input, shape index: {}]
  %s10 = inlined_call_operand.vmem [shape: f32[16,1], index: 10, kind: input, shape index: {}, may-alias: {5,10}]
  %s11 = inlined_call_operand.vmem [shape: f32[2,16,16], index: 11, kind: output, shape index: {0}]
  %s12 = inlined_call_operand.vmem [shape: f32[2,16,64], index: 12, kind: output, shape index: {1}]
  %13 = xla_tuple %s11, %s12
  %s14 = sld [smem:[#allocation0]]
  $region85: #{forward.1} parent=0
    _
  %s16 = ssub.s32 1, %s14
  %s17 = scalar_select 0, %s16, %s14
  loop: start=0, step=1, limit=4
  $region2: #{forward.1} parent=0 // loop_pre_header
    _
  $region3: #{forward.1} parent=0 // loop_header
    %s19 = sphi 0, %s23
    %p20 = scmp.ge.s32.totalorder %s19, 4
    %s29 = sphi 0, %s31
    %s32 = sphi 0, %s29
    %s33 = sphi 0, %s32
    %s49 = sphi 0, %s33
    %s55 = sphi 0, %s57
    %s58 = sphi 0, %s55
    %s59 = sphi 0, %s58
    %s75 = sphi 0, %s59
    %s79 = sphi 0, %s79
    %s81 = sphi 0, %s79
    %s82 = sphi 0, %s81
    %s96 = sphi 0, %s82
    %s100 = sphi 0, %s100
    %s102 = sphi 0, %s100
    %s103 = sphi 0, %s102
    %s117 = sphi 0, %s103
    %s121 = sphi 0, %s121
    %s123 = sphi 0, %s121
    %s124 = sphi 0, %s123
    %s138 = sphi 0, %s124
    %s142 = sphi 0, %s142
    %s144 = sphi 0, %s142
    %s145 = sphi 0, %s144
    %s159 = sphi 0, %s145
    %s165 = sphi 0, %s167
    %s168 = sphi 0, %s165
    %s169 = sphi 0, %s168
    %s185 = sphi 0, %s169
    %s189 = sphi 0, %s189
    %s191 = sphi 0, %s189
    %s192 = sphi 0, %s191
    %s206 = sphi 0, %s192
    %s210 = sphi 0, %s210
    %s212 = sphi 0, %s210
    %s213 = sphi 0, %s212
    %s227 = sphi 0, %s213
    %s231 = sphi 0, %s231
    %s233 = sphi 0, %s231
    %s234 = sphi 0, %s233
    %s248 = sphi 0, %s234
    %s252 = sphi 0, %s252
    %s254 = sphi 0, %s252
    %s255 = sphi 0, %s254
    %s269 = sphi 0, %s255
    %s275 = sphi 0, %s277
    %s278 = sphi 0, %s275
    %s279 = sphi 0, %s278
    %s295 = sphi 0, %s279
    %s301 = sphi 0, %s303
    %s304 = sphi 0, %s301
    %s305 = sphi 0, %s304
    %s321 = sphi 0, %s305
  $region4: #{forward.1} parent=0 // loop_header_branch
    %22 = sbr.rel (%p20) target = $region8
  $region5: #{forward.1} parent=0 // loop_body
    %s24 = ssub.s32 %s19, 1
    %s25 = ssub.s32 %s19, 2
    %s26 = sadd.s32 %s19, 1
    %s27 = ssub.s32 %s19, %s26
    %p28 = scmp.eq.s32.totalorder %s27, 0
    %s30 = sadd.s32 %s29, 1
    %s31 = scalar_select %p28, %s29, %s30
    %p34 = pneg %p28
    %p35 = scmp.eq.s32.totalorder %s19, 1
    %p36 = por %p34, %p35
    %p37 = scmp.ne.s32.totalorder %s29, %s32
    %p38 = scmp.eq.s32.totalorder %s19, 0
    %p39 = por %p37, %p38
    %p40 = scmp.ne.s32.totalorder %s29, %s32
    %p41 = scmp.eq.s32.totalorder %s24, 1
    %p42 = por %p40, %p41
    %p43 = scmp.ne.s32.totalorder %s32, %s33
    %p44 = scmp.eq.s32.totalorder %s24, 0
    %p45 = por %p43, %p44
    %p46 = scmp.ne.s32.totalorder %s32, %s33
    %p47 = scmp.eq.s32.totalorder %s25, 1
    %p48 = por %p46, %p47
    %p50 = scmp.ne.s32.totalorder %s33, %s49
    %p51 = scmp.eq.s32.totalorder %s25, 0
    %p52 = por %p50, %p51
    %s53 = ssub.s32 %s19, %s26
    %p54 = scmp.eq.s32.totalorder %s53, 0
    %s56 = sadd.s32 %s55, 1
    %s57 = scalar_select %p54, %s55, %s56
    %p60 = pneg %p54
    %p61 = scmp.eq.s32.totalorder %s19, 1
    %p62 = por %p60, %p61
    %p63 = scmp.ne.s32.totalorder %s55, %s58
    %p64 = scmp.eq.s32.totalorder %s19, 0
    %p65 = por %p63, %p64
    %p66 = scmp.ne.s32.totalorder %s55, %s58
    %p67 = scmp.eq.s32.totalorder %s24, 1
    %p68 = por %p66, %p67
    %p69 = scmp.ne.s32.totalorder %s58, %s59
    %p70 = scmp.eq.s32.totalorder %s24, 0
    %p71 = por %p69, %p70
    %p72 = scmp.ne.s32.totalorder %s58, %s59
    %p73 = scmp.eq.s32.totalorder %s25, 1
    %p74 = por %p72, %p73
    %p76 = scmp.ne.s32.totalorder %s59, %s75
    %p77 = scmp.eq.s32.totalorder %s25, 0
    %p78 = por %p76, %p77
    %s80 = sadd.s32 %s79, 1
    %p83 = scmp.eq.s32.totalorder %s19, 1
    %p84 = scmp.ne.s32.totalorder %s79, %s81
    %p85 = scmp.eq.s32.totalorder %s19, 0
    %p86 = por %p84, %p85
    %p87 = scmp.ne.s32.totalorder %s79, %s81
    %p88 = scmp.eq.s32.totalorder %s24, 1
    %p89 = por %p87, %p88
    %p90 = scmp.ne.s32.totalorder %s81, %s82
    %p91 = scmp.eq.s32.totalorder %s24, 0
    %p92 = por %p90, %p91
    %p93 = scmp.ne.s32.totalorder %s81, %s82
    %p94 = scmp.eq.s32.totalorder %s25, 1
    %p95 = por %p93, %p94
    %p97 = scmp.ne.s32.totalorder %s82, %s96
    %p98 = scmp.eq.s32.totalorder %s25, 0
    %p99 = por %p97, %p98
    %s101 = sadd.s32 %s100, 1
    %p104 = scmp.eq.s32.totalorder %s19, 1
    %p105 = scmp.ne.s32.totalorder %s100, %s102
    %p106 = scmp.eq.s32.totalorder %s19, 0
    %p107 = por %p105, %p106
    %p108 = scmp.ne.s32.totalorder %s100, %s102
    %p109 = scmp.eq.s32.totalorder %s24, 1
    %p110 = por %p108, %p109
    %p111 = scmp.ne.s32.totalorder %s102, %s103
    %p112 = scmp.eq.s32.totalorder %s24, 0
    %p113 = por %p111, %p112
    %p114 = scmp.ne.s32.totalorder %s102, %s103
    %p115 = scmp.eq.s32.totalorder %s25, 1
    %p116 = por %p114, %p115
    %p118 = scmp.ne.s32.totalorder %s103, %s117
    %p119 = scmp.eq.s32.totalorder %s25, 0
    %p120 = por %p118, %p119
    %s122 = sadd.s32 %s121, 1
    %p125 = scmp.eq.s32.totalorder %s19, 1
    %p126 = scmp.ne.s32.totalorder %s121, %s123
    %p127 = scmp.eq.s32.totalorder %s19, 0
    %p128 = por %p126, %p127
    %p129 = scmp.ne.s32.totalorder %s121, %s123
    %p130 = scmp.eq.s32.totalorder %s24, 1
    %p131 = por %p129, %p130
    %p132 = scmp.ne.s32.totalorder %s123, %s124
    %p133 = scmp.eq.s32.totalorder %s24, 0
    %p134 = por %p132, %p133
    %p135 = scmp.ne.s32.totalorder %s123, %s124
    %p136 = scmp.eq.s32.totalorder %s25, 1
    %p137 = por %p135, %p136
    %p139 = scmp.ne.s32.totalorder %s124, %s138
    %p140 = scmp.eq.s32.totalorder %s25, 0
    %p141 = por %p139, %p140
    %s143 = sadd.s32 %s142, 1
    %p146 = scmp.eq.s32.totalorder %s19, 1
    %p147 = scmp.ne.s32.totalorder %s142, %s144
    %p148 = scmp.eq.s32.totalorder %s19, 0
    %p149 = por %p147, %p148
    %p150 = scmp.ne.s32.totalorder %s142, %s144
    %p151 = scmp.eq.s32.totalorder %s24, 1
    %p152 = por %p150, %p151
    %p153 = scmp.ne.s32.totalorder %s144, %s145
    %p154 = scmp.eq.s32.totalorder %s24, 0
    %p155 = por %p153, %p154
    %p156 = scmp.ne.s32.totalorder %s144, %s145
    %p157 = scmp.eq.s32.totalorder %s25, 1
    %p158 = por %p156, %p157
    %p160 = scmp.ne.s32.totalorder %s145, %s159
    %p161 = scmp.eq.s32.totalorder %s25, 0
    %p162 = por %p160, %p161
    %s163 = ssub.s32 %s19, %s26
    %p164 = scmp.eq.s32.totalorder %s163, 0
    %s166 = sadd.s32 %s165, 1
    %s167 = scalar_select %p164, %s165, %s166
    %p170 = pneg %p164
    %p171 = scmp.eq.s32.totalorder %s19, 1
    %p172 = por %p170, %p171
    %p173 = scmp.ne.s32.totalorder %s165, %s168
    %p174 = scmp.eq.s32.totalorder %s19, 0
    %p175 = por %p173, %p174
    %p176 = scmp.ne.s32.totalorder %s165, %s168
    %p177 = scmp.eq.s32.totalorder %s24, 1
    %p178 = por %p176, %p177
    %p179 = scmp.ne.s32.totalorder %s168, %s169
    %p180 = scmp.eq.s32.totalorder %s24, 0
    %p181 = por %p179, %p180
    %p182 = scmp.ne.s32.totalorder %s168, %s169
    %p183 = scmp.eq.s32.totalorder %s25, 1
    %p184 = por %p182, %p183
    %p186 = scmp.ne.s32.totalorder %s169, %s185
    %p187 = scmp.eq.s32.totalorder %s25, 0
    %p188 = por %p186, %p187
    %s190 = sadd.s32 %s189, 1
    %p193 = scmp.eq.s32.totalorder %s19, 1
    %p194 = scmp.ne.s32.totalorder %s189, %s191
    %p195 = scmp.eq.s32.totalorder %s19, 0
    %p196 = por %p194, %p195
    %p197 = scmp.ne.s32.totalorder %s189, %s191
    %p198 = scmp.eq.s32.totalorder %s24, 1
    %p199 = por %p197, %p198
    %p200 = scmp.ne.s32.totalorder %s191, %s192
    %p201 = scmp.eq.s32.totalorder %s24, 0
    %p202 = por %p200, %p201
    %p203 = scmp.ne.s32.totalorder %s191, %s192
    %p204 = scmp.eq.s32.totalorder %s25, 1
    %p205 = por %p203, %p204
    %p207 = scmp.ne.s32.totalorder %s192, %s206
    %p208 = scmp.eq.s32.totalorder %s25, 0
    %p209 = por %p207, %p208
    %s211 = sadd.s32 %s210, 1
    %p214 = scmp.eq.s32.totalorder %s19, 1
    %p215 = scmp.ne.s32.totalorder %s210, %s212
    %p216 = scmp.eq.s32.totalorder %s19, 0
    %p217 = por %p215, %p216
    %p218 = scmp.ne.s32.totalorder %s210, %s212
    %p219 = scmp.eq.s32.totalorder %s24, 1
    %p220 = por %p218, %p219
    %p221 = scmp.ne.s32.totalorder %s212, %s213
    %p222 = scmp.eq.s32.totalorder %s24, 0
    %p223 = por %p221, %p222
    %p224 = scmp.ne.s32.totalorder %s212, %s213
    %p225 = scmp.eq.s32.totalorder %s25, 1
    %p226 = por %p224, %p225
    %p228 = scmp.ne.s32.totalorder %s213, %s227
    %p229 = scmp.eq.s32.totalorder %s25, 0
    %p230 = por %p228, %p229
    %s232 = sadd.s32 %s231, 1
    %p235 = scmp.eq.s32.totalorder %s19, 1
    %p236 = scmp.ne.s32.totalorder %s231, %s233
    %p237 = scmp.eq.s32.totalorder %s19, 0
    %p238 = por %p236, %p237
    %p239 = scmp.ne.s32.totalorder %s231, %s233
    %p240 = scmp.eq.s32.totalorder %s24, 1
    %p241 = por %p239, %p240
    %p242 = scmp.ne.s32.totalorder %s233, %s234
    %p243 = scmp.eq.s32.totalorder %s24, 0
    %p244 = por %p242, %p243
    %p245 = scmp.ne.s32.totalorder %s233, %s234
    %p246 = scmp.eq.s32.totalorder %s25, 1
    %p247 = por %p245, %p246
    %p249 = scmp.ne.s32.totalorder %s234, %s248
    %p250 = scmp.eq.s32.totalorder %s25, 0
    %p251 = por %p249, %p250
    %s253 = sadd.s32 %s252, 1
    %p256 = scmp.eq.s32.totalorder %s19, 1
    %p257 = scmp.ne.s32.totalorder %s252, %s254
    %p258 = scmp.eq.s32.totalorder %s19, 0
    %p259 = por %p257, %p258
    %p260 = scmp.ne.s32.totalorder %s252, %s254
    %p261 = scmp.eq.s32.totalorder %s24, 1
    %p262 = por %p260, %p261
    %p263 = scmp.ne.s32.totalorder %s254, %s255
    %p264 = scmp.eq.s32.totalorder %s24, 0
    %p265 = por %p263, %p264
    %p266 = scmp.ne.s32.totalorder %s254, %s255
    %p267 = scmp.eq.s32.totalorder %s25, 1
    %p268 = por %p266, %p267
    %p270 = scmp.ne.s32.totalorder %s255, %s269
    %p271 = scmp.eq.s32.totalorder %s25, 0
    %p272 = por %p270, %p271
    %s273 = ssub.s32 %s19, %s26
    %p274 = scmp.eq.s32.totalorder %s273, 0
    %s276 = sadd.s32 %s275, 1
    %s277 = scalar_select %p274, %s275, %s276
    %p280 = pneg %p274
    %p281 = scmp.eq.s32.totalorder %s19, 1
    %p282 = por %p280, %p281
    %p283 = scmp.ne.s32.totalorder %s275, %s278
    %p284 = scmp.eq.s32.totalorder %s19, 0
    %p285 = por %p283, %p284
    %p286 = scmp.ne.s32.totalorder %s275, %s278
    %p287 = scmp.eq.s32.totalorder %s24, 1
    %p288 = por %p286, %p287
    %p289 = scmp.ne.s32.totalorder %s278, %s279
    %p290 = scmp.eq.s32.totalorder %s24, 0
    %p291 = por %p289, %p290
    %p292 = scmp.ne.s32.totalorder %s278, %s279
    %p293 = scmp.eq.s32.totalorder %s25, 1
    %p294 = por %p292, %p293
    %p296 = scmp.ne.s32.totalorder %s279, %s295
    %p297 = scmp.eq.s32.totalorder %s25, 0
    %p298 = por %p296, %p297
    %s299 = ssub.s32 %s19, %s26
    %p300 = scmp.eq.s32.totalorder %s299, 0
    %s302 = sadd.s32 %s301, 1
    %s303 = scalar_select %p300, %s301, %s302
    %p306 = pneg %p300
    %p307 = scmp.eq.s32.totalorder %s19, 1
    %p308 = por %p306, %p307
    %p309 = scmp.ne.s32.totalorder %s301, %s304
    %p310 = scmp.eq.s32.totalorder %s19, 0
    %p311 = por %p309, %p310
    %p312 = scmp.ne.s32.totalorder %s301, %s304
    %p313 = scmp.eq.s32.totalorder %s24, 1
    %p314 = por %p312, %p313
    %p315 = scmp.ne.s32.totalorder %s304, %s305
    %p316 = scmp.eq.s32.totalorder %s24, 0
    %p317 = por %p315, %p316
    %p318 = scmp.ne.s32.totalorder %s304, %s305
    %p319 = scmp.eq.s32.totalorder %s25, 1
    %p320 = por %p318, %p319
    %p322 = scmp.ne.s32.totalorder %s305, %s321
    %p323 = scmp.eq.s32.totalorder %s25, 0
    %p324 = por %p322, %p323
    %p325 = scmp.le.s32.totalorder 1, %s19
    %p326 = scmp.lt.s32.totalorder %s19, 3
    %p327 = pnand %p325, %p326
    %p328 = pneg %p327
    // Predicated region
    $region9: #{forward.1} parent=5 // pred_check
      _
    $region10: #{forward.1} parent=5 // pred_check_branch
      %330 = sbr.rel (%p327) target = $region12
    $region11: #{forward.1} parent=5 // pred_region
      %s331 = ssub.s32 %s19, 1
      // Predicated region
      $region13: #{forward.1} parent=11 // pred_check
        %p332 = pneg %p92
      $region14: #{forward.1} parent=11 // pred_check_branch
        %334 = sbr.rel (%p332) target = $region16
      $region15: #{forward.1} parent=11 // pred_region
        _
      $region16: #{forward.1} parent=11 // pred_fallthru
        _
      // Predicated region
      $region17: #{forward.1} parent=11 // pred_check
        %p335 = pneg %p113
      $region18: #{forward.1} parent=11 // pred_check_branch
        %337 = sbr.rel (%p335) target = $region20
      $region19: #{forward.1} parent=11 // pred_region
        _
      $region20: #{forward.1} parent=11 // pred_fallthru
        _
      // Predicated region
      $region21: #{forward.1} parent=11 // pred_check
        %p338 = pneg %p134
      $region22: #{forward.1} parent=11 // pred_check_branch
        %340 = sbr.rel (%p338) target = $region24
      $region23: #{forward.1} parent=11 // pred_region
        _
      $region24: #{forward.1} parent=11 // pred_fallthru
        _
      // Predicated region
      $region25: #{forward.1} parent=11 // pred_check
        %p341 = pneg %p155
      $region26: #{forward.1} parent=11 // pred_check_branch
        %343 = sbr.rel (%p341) target = $region28
      $region27: #{forward.1} parent=11 // pred_region
        _
      $region28: #{forward.1} parent=11 // pred_fallthru
        _
      // Predicated region
      $region29: #{forward.1} parent=11 // pred_check
        %p344 = pneg %p202
      $region30: #{forward.1} parent=11 // pred_check_branch
        %346 = sbr.rel (%p344) target = $region32
      $region31: #{forward.1} parent=11 // pred_region
        _
      $region32: #{forward.1} parent=11 // pred_fallthru
        _
      // Predicated region
      $region33: #{forward.1} parent=11 // pred_check
        %p347 = pneg %p223
      $region34: #{forward.1} parent=11 // pred_check_branch
        %349 = sbr.rel (%p347) target = $region36
      $region35: #{forward.1} parent=11 // pred_region
        _
      $region36: #{forward.1} parent=11 // pred_fallthru
        _
      // Predicated region
      $region37: #{forward.1} parent=11 // pred_check
        %p350 = pneg %p244
      $region38: #{forward.1} parent=11 // pred_check_branch
        %352 = sbr.rel (%p350) target = $region40
      $region39: #{forward.1} parent=11 // pred_region
        _
      $region40: #{forward.1} parent=11 // pred_fallthru
        _
      // Predicated region
      $region41: #{forward.1} parent=11 // pred_check
        %p353 = pneg %p265
      $region42: #{forward.1} parent=11 // pred_check_branch
        %355 = sbr.rel (%p353) target = $region44
      $region43: #{forward.1} parent=11 // pred_region
        _
      $region44: #{forward.1} parent=11 // pred_fallthru
        _
    $region12: #{forward.1} parent=5 // pred_fallthru
      _
    %p356 = scmp.lt.s32.totalorder %s19, 2
    // Predicated region
    $region45: #{forward.1} parent=5 // pred_check
      %p357 = pneg %p356
    $region46: #{forward.1} parent=5 // pred_check_branch
      %359 = sbr.rel (%p357) target = $region48
    $region47: #{forward.1} parent=5 // pred_region
      // Predicated region
      $region49: #{forward.1} parent=47 // pred_check
        %p360 = pneg %p39
      $region50: #{forward.1} parent=47 // pred_check_branch
        %362 = sbr.rel (%p360) target = $region52
      $region51: #{forward.1} parent=47 // pred_region
        %p363 = scmp.lt.s32.totalorder %s19, 1
        %s364 = scalar_select %p363, %s19, 1
        %s365 = smul.addr %s364, 4
        %s366 = smul.addr %s365, 8
        %s367 = scalar_lea.vmem %s0, %s366
      $region52: #{forward.1} parent=47 // pred_fallthru
        _
      // Predicated region
      $region53: #{forward.1} parent=47 // pred_check
        %p368 = pneg %p65
      $region54: #{forward.1} parent=47 // pred_check_branch
        %370 = sbr.rel (%p368) target = $region56
      $region55: #{forward.1} parent=47 // pred_region
        %p371 = scmp.lt.s32.totalorder %s19, 1
        %s372 = scalar_select %p371, %s19, 1
        %s373 = smul.addr %s372, 2
        %s374 = smul.addr %s373, 8
        %s375 = scalar_lea.vmem %s1, %s374
      $region56: #{forward.1} parent=47 // pred_fallthru
        _
      // Predicated region
      $region57: #{forward.1} parent=47 // pred_check
        %p376 = pneg %p175
      $region58: #{forward.1} parent=47 // pred_check_branch
        %378 = sbr.rel (%p376) target = $region60
      $region59: #{forward.1} parent=47 // pred_region
        %p379 = scmp.lt.s32.totalorder %s19, 1
        %s380 = scalar_select %p379, %s19, 1
        %s381 = smul.addr %s380, 8
        %s382 = scalar_lea.vmem %s6, %s381
      $region60: #{forward.1} parent=47 // pred_fallthru
        _
    $region48: #{forward.1} parent=5 // pred_fallthru
      _
    %p383 = scmp.le.s32.totalorder 1, %s19
    %p384 = scmp.lt.s32.totalorder %s19, 3
    %p385 = pnand %p383, %p384
    %p386 = pneg %p385
    // Predicated region
    $region61: #{forward.1} parent=5 // pred_check
      _
    $region62: #{forward.1} parent=5 // pred_check_branch
      %388 = sbr.rel (%p385) target = $region64
    $region63: #{forward.1} parent=5 // pred_region
      %s389 = ssub.s32 %s19, 1
      %p390 = scmp.lt.s32.totalorder %s24, 1
      %s391 = scalar_select %p390, %s24, 1
      %s392 = smul.addr %s391, 4
      %s393 = smul.addr %s392, 8
      %s394 = scalar_lea.vmem %s0, %s393
      %p395 = pneg %p45
      %p396 = pneg %p42
      %p397 = scmp.lt.s32.totalorder %s24, 1
      %s398 = scalar_select %p397, %s24, 1
      %s399 = smul.addr %s398, 2
      %s400 = smul.addr %s399, 8
      %s401 = scalar_lea.vmem %s1, %s400
      %p402 = pneg %p71
      %p403 = pneg %p68
      %p404 = pneg %p92
      %p405 = pneg %p89
      %p406 = pneg %p113
      %p407 = pneg %p110
      %p408 = pneg %p134
      %p409 = pneg %p131
      %p410 = pneg %p155
      %p411 = pneg %p152
      %p412 = scmp.lt.s32.totalorder %s24, 1
      %s413 = scalar_select %p412, %s24, 1
      %s414 = smul.addr %s413, 8
      %s415 = scalar_lea.vmem %s6, %s414
      %p416 = pneg %p181
      %p417 = pneg %p178
      %p418 = pneg %p202
      %p419 = pneg %p199
      %p420 = pneg %p223
      %p421 = pneg %p220
      %p422 = pneg %p244
      %p423 = pneg %p241
      %p424 = pneg %p265
      %p425 = pneg %p262
      %p426 = pneg %p291
      %p427 = pneg %p288
      %p428 = scmp.lt.s32.totalorder %s24, 1
      %s429 = scalar_select %p428, %s24, 1
      %s430 = smul.addr %s429, 2
      %s431 = smul.addr %s430, 8
      %s432 = scalar_lea.vmem %s11, %s431
      %p433 = pneg %p317
      %p434 = pneg %p314
      %p435 = scmp.lt.s32.totalorder %s24, 1
      %s436 = scalar_select %p435, %s24, 1
      %s437 = smul.addr %s436, 2
      %s438 = smul.addr %s437, 8
      %s439 = scalar_lea.vmem %s12, %s438
      %p440 = scmp.lt.s32.totalorder %s24, 1
      %s441 = scalar_select %p440, %s24, 1
      %s442 = smul.addr %s441, 4
      %s443 = smul.addr %s442, 8
      %s444 = scalar_lea.vmem %s0, %s443
      %p445 = scmp.lt.s32.totalorder %s24, 1
      %s446 = scalar_select %p445, %s24, 1
      %s447 = smul.addr %s446, 2
      %s448 = smul.addr %s447, 8
      %s449 = scalar_lea.vmem %s1, %s448
      %p450 = scmp.lt.s32.totalorder %s24, 1
      %s451 = scalar_select %p450, %s24, 1
      %s452 = smul.addr %s451, 8
      %s453 = scalar_lea.vmem %s6, %s452
      %p454 = scmp.lt.s32.totalorder %s24, 1
      %s455 = scalar_select %p454, %s24, 1
      %s456 = smul.addr %s455, 2
      %s457 = smul.addr %s456, 8
      %s458 = scalar_lea.vmem %s11, %s457
      %p459 = scmp.lt.s32.totalorder %s24, 1
      %s460 = scalar_select %p459, %s24, 1
      %s461 = smul.addr %s460, 2
      %s462 = smul.addr %s461, 8
      %s463 = scalar_lea.vmem %s12, %s462
      %v465 = vld [vmem:[%s444] sm:$0xff]
      %v466 = vld [vmem:[%s444 + $0x8] sm:$0xff]
      %v467 = vld [vmem:[%s444 + $0x10] sm:$0xff]
      %v468 = vld [vmem:[%s444 + $0x18] sm:$0xff]
      %473 = vrot.lane.b32.xlu0 %v465, 1
      %v474 = vpop.permute.xlu0 %473
      %475 = vrot.lane.b32.xlu0 %v466, 1
      %v476 = vpop.permute.xlu0 %475
      %477 = vrot.lane.b32.xlu0 %v467, 1
      %v478 = vpop.permute.xlu0 %477
      %479 = vrot.lane.b32.xlu0 %v468, 1
      %v480 = vpop.permute.xlu0 %479
      %485 = vrot.lane.b32.xlu0 %v465, 2
      %v486 = vpop.permute.xlu0 %485
      %487 = vrot.lane.b32.xlu0 %v466, 2
      %v488 = vpop.permute.xlu0 %487
      %489 = vrot.lane.b32.xlu0 %v467, 2
      %v490 = vpop.permute.xlu0 %489
      %491 = vrot.lane.b32.xlu0 %v468, 2
      %v492 = vpop.permute.xlu0 %491
      %497 = vrot.lane.b32.xlu0 %v465, 3
      %v498 = vpop.permute.xlu0 %497
      %499 = vrot.lane.b32.xlu0 %v466, 3
      %v500 = vpop.permute.xlu0 %499
      %501 = vrot.lane.b32.xlu0 %v467, 3
      %v502 = vpop.permute.xlu0 %501
      %503 = vrot.lane.b32.xlu0 %v468, 3
      %v504 = vpop.permute.xlu0 %503
      %vm509 = vcmask 7168
      %v510 = vsel %vm509, 0.0, %v474
      %v511 = vsel %vm509, 0.0, %v476
      %v512 = vsel %vm509, 0.0, %v478
      %v513 = vsel %vm509, 0.0, %v480
      %vm514 = vcmask 15360
      %v515 = vsel %vm514, %v510, %v486
      %v516 = vsel %vm514, %v511, %v488
      %v517 = vsel %vm514, %v512, %v490
      %v518 = vsel %vm514, %v513, %v492
      %vm519 = vcmask 23552
      %v520 = vsel %vm519, %v515, %v486
      %v521 = vsel %vm519, %v516, %v488
      %v522 = vsel %vm519, %v517, %v490
      %v523 = vsel %vm519, %v518, %v492
      %vm524 = vcmask 31744
      %v525 = vsel %vm524, %v520, %v498
      %v526 = vsel %vm524, %v521, %v500
      %v527 = vsel %vm524, %v522, %v502
      %v528 = vsel %vm524, %v523, %v504
      %vm529 = vcmask 39936
      %v530 = vsel %vm529, %v525, 0.0
      %v531 = vsel %vm529, %v526, 0.0
      %v532 = vsel %vm529, %v527, 0.0
      %v533 = vsel %vm529, %v528, 0.0
      %534 = vrot.lane.b32.xlu0 %v465, 127
      %v535 = vpop.permute.xlu0 %534
      %536 = vrot.lane.b32.xlu0 %v466, 127
      %v537 = vpop.permute.xlu0 %536
      %538 = vrot.lane.b32.xlu0 %v467, 127
      %v539 = vpop.permute.xlu0 %538
      %540 = vrot.lane.b32.xlu0 %v468, 127
      %v541 = vpop.permute.xlu0 %540
      %v546 = vsel %vm509, 0.0, %v535
      %v547 = vsel %vm509, 0.0, %v537
      %v548 = vsel %vm509, 0.0, %v539
      %v549 = vsel %vm509, 0.0, %v541
      %v550 = vsel %vm514, %v546, %v465
      %v551 = vsel %vm514, %v547, %v466
      %v552 = vsel %vm514, %v548, %v467
      %v553 = vsel %vm514, %v549, %v468
      %v554 = vsel %vm519, %v550, %v465
      %v555 = vsel %vm519, %v551, %v466
      %v556 = vsel %vm519, %v552, %v467
      %v557 = vsel %vm519, %v553, %v468
      %v558 = vsel %vm524, %v554, %v474
      %v559 = vsel %vm524, %v555, %v476
      %v560 = vsel %vm524, %v556, %v478
      %v561 = vsel %vm524, %v557, %v480
      %v562 = vsel %vm529, %v558, 0.0
      %v563 = vsel %vm529, %v559, 0.0
      %v564 = vsel %vm529, %v560, 0.0
      %v565 = vsel %vm529, %v561, 0.0
      %570 = vrot.lane.b32.xlu0 %v530, 6
      %v571 = vpop.permute.xlu0 %570
      %572 = vrot.lane.b32.xlu0 %v531, 6
      %v573 = vpop.permute.xlu0 %572
      %574 = vrot.lane.b32.xlu0 %v532, 6
      %v575 = vpop.permute.xlu0 %574
      %576 = vrot.lane.b32.xlu0 %v533, 6
      %v577 = vpop.permute.xlu0 %576
      %582 = vrot.lane.b32.xlu0 %v530, 12
      %v583 = vpop.permute.xlu0 %582
      %584 = vrot.lane.b32.xlu0 %v531, 12
      %v585 = vpop.permute.xlu0 %584
      %586 = vrot.lane.b32.xlu0 %v532, 12
      %v587 = vpop.permute.xlu0 %586
      %588 = vrot.lane.b32.xlu0 %v533, 12
      %v589 = vpop.permute.xlu0 %588
      %598 = vrot.lane.b32.xlu0 %v562, 18
      %v599 = vpop.permute.xlu0 %598
      %600 = vrot.lane.b32.xlu0 %v563, 18
      %v601 = vpop.permute.xlu0 %600
      %602 = vrot.lane.b32.xlu0 %v564, 18
      %v603 = vpop.permute.xlu0 %602
      %604 = vrot.lane.b32.xlu0 %v565, 18
      %v605 = vpop.permute.xlu0 %604
      %610 = vrot.lane.b32.xlu0 %v562, 24
      %v611 = vpop.permute.xlu0 %610
      %612 = vrot.lane.b32.xlu0 %v563, 24
      %v613 = vpop.permute.xlu0 %612
      %614 = vrot.lane.b32.xlu0 %v564, 24
      %v615 = vpop.permute.xlu0 %614
      %616 = vrot.lane.b32.xlu0 %v565, 24
      %v617 = vpop.permute.xlu0 %616
      %vm622 = vcmask 48128
      %v623 = vsel %vm622, 0.0, %v571
      %v624 = vsel %vm622, 0.0, %v573
      %v625 = vsel %vm622, 0.0, %v575
      %v626 = vsel %vm622, 0.0, %v577
      %vm627 = vcmask 97280
      %v628 = vsel %vm627, %v623, %v583
      %v629 = vsel %vm627, %v624, %v585
      %v630 = vsel %vm627, %v625, %v587
      %v631 = vsel %vm627, %v626, %v589
      %vm632 = vcmask 146432
      %v633 = vsel %vm632, %v628, %v599
      %v634 = vsel %vm632, %v629, %v601
      %v635 = vsel %vm632, %v630, %v603
      %v636 = vsel %vm632, %v631, %v605
      %vm637 = vcmask 195584
      %v638 = vsel %vm637, %v633, %v611
      %v639 = vsel %vm637, %v634, %v613
      %v640 = vsel %vm637, %v635, %v615
      %v641 = vsel %vm637, %v636, %v617
      %vm642 = vcmask 244736
      %v643 = vsel %vm642, %v638, 0.0
      %v644 = vsel %vm642, %v639, 0.0
      %v645 = vsel %vm642, %v640, 0.0
      %v646 = vsel %vm642, %v641, 0.0
      %v647 = vld [vmem:[%s449] sm:$0xff]
      %v648 = vld [vmem:[%s449 + $0x8] sm:$0xff]
      %v649 = vld [vmem:[%s2] sm:$0xff]
      %v650 = vld [vmem:[%s2 + $0x8] sm:$0xff]
      %v651 = vld [vmem:[%s2 + $0x10] sm:$0xff]
      %v652 = vld [vmem:[%s2 + $0x18] sm:$0xff]
      %v653 = vld [vmem:[%s2 + $0x20] sm:$0xff]
      %v654 = vld [vmem:[%s2 + $0x28] sm:$0xff]
      %656 = vset.pattern.permute.xlu0 0
      %657 = vperm.xlu0 %656, %v649
      %v658 = vpop.permute.xlu0 %657
      %661 = vset.pattern.permute.xlu0 0
      %662 = vperm.xlu0 %661, %v650
      %v663 = vpop.permute.xlu0 %662
      %666 = vset.pattern.permute.xlu0 0
      %667 = vperm.xlu0 %666, %v651
      %v668 = vpop.permute.xlu0 %667
      %671 = vset.pattern.permute.xlu0 0
      %672 = vperm.xlu0 %671, %v652
      %v673 = vpop.permute.xlu0 %672
      %676 = vset.pattern.permute.xlu0 0
      %677 = vperm.xlu0 %676, %v653
      %v678 = vpop.permute.xlu0 %677
      %681 = vset.pattern.permute.xlu0 0
      %682 = vperm.xlu0 %681, %v654
      %v683 = vpop.permute.xlu0 %682
      %v685 = vmul.f32 %v643, %v658
      %v686 = vmul.f32 %v644, %v663
      %v687 = vmul.f32 %v645, %v668
      %v688 = vmul.f32 %v646, %v673
      %v689 = vmul.f32 %v647, %v678
      %v690 = vmul.f32 %v648, %v683
      %691 = vset.pattern.permute.xlu0 1
      %692 = vperm.xlu0 %691, %v649
      %v693 = vpop.permute.xlu0 %692
      %695 = vset.pattern.permute.xlu0 1
      %696 = vperm.xlu0 %695, %v650
      %v697 = vpop.permute.xlu0 %696
      %699 = vset.pattern.permute.xlu0 1
      %700 = vperm.xlu0 %699, %v651
      %v701 = vpop.permute.xlu0 %700
      %703 = vset.pattern.permute.xlu0 1
      %704 = vperm.xlu0 %703, %v652
      %v705 = vpop.permute.xlu0 %704
      %707 = vset.pattern.permute.xlu0 1
      %708 = vperm.xlu0 %707, %v653
      %v709 = vpop.permute.xlu0 %708
      %711 = vset.pattern.permute.xlu0 1
      %712 = vperm.xlu0 %711, %v654
      %v713 = vpop.permute.xlu0 %712
      %v715 = vmul.f32 %v643, %v693
      %v716 = vmul.f32 %v644, %v697
      %v717 = vmul.f32 %v645, %v701
      %v718 = vmul.f32 %v646, %v705
      %v719 = vmul.f32 %v647, %v709
      %v720 = vmul.f32 %v648, %v713
      %727 = vrot.lane.b32.xlu0 %v715, 127
      %v728 = vpop.permute.xlu0 %727
      %729 = vrot.lane.b32.xlu0 %v716, 127
      %v730 = vpop.permute.xlu0 %729
      %731 = vrot.lane.b32.xlu0 %v717, 127
      %v732 = vpop.permute.xlu0 %731
      %733 = vrot.lane.b32.xlu0 %v718, 127
      %v734 = vpop.permute.xlu0 %733
      %735 = vrot.lane.b32.xlu0 %v719, 127
      %v736 = vpop.permute.xlu0 %735
      %737 = vrot.lane.b32.xlu0 %v720, 127
      %v738 = vpop.permute.xlu0 %737
      %v745 = vadd.f32 %v685, %v728
      %v746 = vadd.f32 %v686, %v730
      %v747 = vadd.f32 %v687, %v732
      %v748 = vadd.f32 %v688, %v734
      %v749 = vadd.f32 %v689, %v736
      %v750 = vadd.f32 %v690, %v738
      %751 = vset.pattern.permute.xlu0 2
      %752 = vperm.xlu0 %751, %v649
      %v753 = vpop.permute.xlu0 %752
      %755 = vset.pattern.permute.xlu0 2
      %756 = vperm.xlu0 %755, %v650
      %v757 = vpop.permute.xlu0 %756
      %759 = vset.pattern.permute.xlu0 2
      %760 = vperm.xlu0 %759, %v651
      %v761 = vpop.permute.xlu0 %760
      %763 = vset.pattern.permute.xlu0 2
      %764 = vperm.xlu0 %763, %v652
      %v765 = vpop.permute.xlu0 %764
      %767 = vset.pattern.permute.xlu0 2
      %768 = vperm.xlu0 %767, %v653
      %v769 = vpop.permute.xlu0 %768
      %771 = vset.pattern.permute.xlu0 2
      %772 = vperm.xlu0 %771, %v654
      %v773 = vpop.permute.xlu0 %772
      %v775 = vmul.f32 %v643, %v753
      %v776 = vmul.f32 %v644, %v757
      %v777 = vmul.f32 %v645, %v761
      %v778 = vmul.f32 %v646, %v765
      %v779 = vmul.f32 %v647, %v769
      %v780 = vmul.f32 %v648, %v773
      %787 = vrot.lane.b32.xlu0 %v775, 126
      %v788 = vpop.permute.xlu0 %787
      %789 = vrot.lane.b32.xlu0 %v776, 126
      %v790 = vpop.permute.xlu0 %789
      %791 = vrot.lane.b32.xlu0 %v777, 126
      %v792 = vpop.permute.xlu0 %791
      %793 = vrot.lane.b32.xlu0 %v778, 126
      %v794 = vpop.permute.xlu0 %793
      %795 = vrot.lane.b32.xlu0 %v779, 126
      %v796 = vpop.permute.xlu0 %795
      %797 = vrot.lane.b32.xlu0 %v780, 126
      %v798 = vpop.permute.xlu0 %797
      %v805 = vadd.f32 %v745, %v788
      %v806 = vadd.f32 %v746, %v790
      %v807 = vadd.f32 %v747, %v792
      %v808 = vadd.f32 %v748, %v794
      %v809 = vadd.f32 %v749, %v796
      %v810 = vadd.f32 %v750, %v798
      %811 = vset.pattern.permute.xlu0 3
      %812 = vperm.xlu0 %811, %v649
      %v813 = vpop.permute.xlu0 %812
      %815 = vset.pattern.permute.xlu0 3
      %816 = vperm.xlu0 %815, %v650
      %v817 = vpop.permute.xlu0 %816
      %819 = vset.pattern.permute.xlu0 3
      %820 = vperm.xlu0 %819, %v651
      %v821 = vpop.permute.xlu0 %820
      %823 = vset.pattern.permute.xlu0 3
      %824 = vperm.xlu0 %823, %v652
      %v825 = vpop.permute.xlu0 %824
      %827 = vset.pattern.permute.xlu0 3
      %828 = vperm.xlu0 %827, %v653
      %v829 = vpop.permute.xlu0 %828
      %831 = vset.pattern.permute.xlu0 3
      %832 = vperm.xlu0 %831, %v654
      %v833 = vpop.permute.xlu0 %832
      %v835 = vmul.f32 %v643, %v813
      %v836 = vmul.f32 %v644, %v817
      %v837 = vmul.f32 %v645, %v821
      %v838 = vmul.f32 %v646, %v825
      %v839 = vmul.f32 %v647, %v829
      %v840 = vmul.f32 %v648, %v833
      %847 = vrot.lane.b32.xlu0 %v835, 122
      %v848 = vpop.permute.xlu0 %847
      %849 = vrot.lane.b32.xlu0 %v836, 122
      %v850 = vpop.permute.xlu0 %849
      %851 = vrot.lane.b32.xlu0 %v837, 122
      %v852 = vpop.permute.xlu0 %851
      %853 = vrot.lane.b32.xlu0 %v838, 122
      %v854 = vpop.permute.xlu0 %853
      %855 = vrot.lane.b32.xlu0 %v839, 122
      %v856 = vpop.permute.xlu0 %855
      %857 = vrot.lane.b32.xlu0 %v840, 122
      %v858 = vpop.permute.xlu0 %857
      %v865 = vadd.f32 %v805, %v848
      %v866 = vadd.f32 %v806, %v850
      %v867 = vadd.f32 %v807, %v852
      %v868 = vadd.f32 %v808, %v854
      %v869 = vadd.f32 %v809, %v856
      %v870 = vadd.f32 %v810, %v858
      %871 = vset.pattern.permute.xlu0 4
      %872 = vperm.xlu0 %871, %v649
      %v873 = vpop.permute.xlu0 %872
      %875 = vset.pattern.permute.xlu0 4
      %876 = vperm.xlu0 %875, %v650
      %v877 = vpop.permute.xlu0 %876
      %879 = vset.pattern.permute.xlu0 4
      %880 = vperm.xlu0 %879, %v651
      %v881 = vpop.permute.xlu0 %880
      %883 = vset.pattern.permute.xlu0 4
      %884 = vperm.xlu0 %883, %v652
      %v885 = vpop.permute.xlu0 %884
      %887 = vset.pattern.permute.xlu0 4
      %888 = vperm.xlu0 %887, %v653
      %v889 = vpop.permute.xlu0 %888
      %891 = vset.pattern.permute.xlu0 4
      %892 = vperm.xlu0 %891, %v654
      %v893 = vpop.permute.xlu0 %892
      %v895 = vmul.f32 %v643, %v873
      %v896 = vmul.f32 %v644, %v877
      %v897 = vmul.f32 %v645, %v881
      %v898 = vmul.f32 %v646, %v885
      %v899 = vmul.f32 %v647, %v889
      %v900 = vmul.f32 %v648, %v893
      %907 = vrot.lane.b32.xlu0 %v895, 121
      %v908 = vpop.permute.xlu0 %907
      %909 = vrot.lane.b32.xlu0 %v896, 121
      %v910 = vpop.permute.xlu0 %909
      %911 = vrot.lane.b32.xlu0 %v897, 121
      %v912 = vpop.permute.xlu0 %911
      %913 = vrot.lane.b32.xlu0 %v898, 121
      %v914 = vpop.permute.xlu0 %913
      %915 = vrot.lane.b32.xlu0 %v899, 121
      %v916 = vpop.permute.xlu0 %915
      %917 = vrot.lane.b32.xlu0 %v900, 121
      %v918 = vpop.permute.xlu0 %917
      %v925 = vadd.f32 %v865, %v908
      %v926 = vadd.f32 %v866, %v910
      %v927 = vadd.f32 %v867, %v912
      %v928 = vadd.f32 %v868, %v914
      %v929 = vadd.f32 %v869, %v916
      %v930 = vadd.f32 %v870, %v918
      %931 = vset.pattern.permute.xlu0 5
      %932 = vperm.xlu0 %931, %v649
      %v933 = vpop.permute.xlu0 %932
      %935 = vset.pattern.permute.xlu0 5
      %936 = vperm.xlu0 %935, %v650
      %v937 = vpop.permute.xlu0 %936
      %939 = vset.pattern.permute.xlu0 5
      %940 = vperm.xlu0 %939, %v651
      %v941 = vpop.permute.xlu0 %940
      %943 = vset.pattern.permute.xlu0 5
      %944 = vperm.xlu0 %943, %v652
      %v945 = vpop.permute.xlu0 %944
      %947 = vset.pattern.permute.xlu0 5
      %948 = vperm.xlu0 %947, %v653
      %v949 = vpop.permute.xlu0 %948
      %951 = vset.pattern.permute.xlu0 5
      %952 = vperm.xlu0 %951, %v654
      %v953 = vpop.permute.xlu0 %952
      %v955 = vmul.f32 %v643, %v933
      %v956 = vmul.f32 %v644, %v937
      %v957 = vmul.f32 %v645, %v941
      %v958 = vmul.f32 %v646, %v945
      %v959 = vmul.f32 %v647, %v949
      %v960 = vmul.f32 %v648, %v953
      %967 = vrot.lane.b32.xlu0 %v955, 120
      %v968 = vpop.permute.xlu0 %967
      %969 = vrot.lane.b32.xlu0 %v956, 120
      %v970 = vpop.permute.xlu0 %969
      %971 = vrot.lane.b32.xlu0 %v957, 120
      %v972 = vpop.permute.xlu0 %971
      %973 = vrot.lane.b32.xlu0 %v958, 120
      %v974 = vpop.permute.xlu0 %973
      %975 = vrot.lane.b32.xlu0 %v959, 120
      %v976 = vpop.permute.xlu0 %975
      %977 = vrot.lane.b32.xlu0 %v960, 120
      %v978 = vpop.permute.xlu0 %977
      %v985 = vadd.f32 %v925, %v968
      %v986 = vadd.f32 %v926, %v970
      %v987 = vadd.f32 %v927, %v972
      %v988 = vadd.f32 %v928, %v974
      %v989 = vadd.f32 %v929, %v976
      %v990 = vadd.f32 %v930, %v978
      %991 = vset.pattern.permute.xlu0 6
      %992 = vperm.xlu0 %991, %v649
      %v993 = vpop.permute.xlu0 %992
      %995 = vset.pattern.permute.xlu0 6
      %996 = vperm.xlu0 %995, %v650
      %v997 = vpop.permute.xlu0 %996
      %999 = vset.pattern.permute.xlu0 6
      %1000 = vperm.xlu0 %999, %v651
      %v1001 = vpop.permute.xlu0 %1000
      %1003 = vset.pattern.permute.xlu0 6
      %1004 = vperm.xlu0 %1003, %v652
      %v1005 = vpop.permute.xlu0 %1004
      %1007 = vset.pattern.permute.xlu0 6
      %1008 = vperm.xlu0 %1007, %v653
      %v1009 = vpop.permute.xlu0 %1008
      %1011 = vset.pattern.permute.xlu0 6
      %1012 = vperm.xlu0 %1011, %v654
      %v1013 = vpop.permute.xlu0 %1012
      %v1015 = vmul.f32 %v643, %v993
      %v1016 = vmul.f32 %v644, %v997
      %v1017 = vmul.f32 %v645, %v1001
      %v1018 = vmul.f32 %v646, %v1005
      %v1019 = vmul.f32 %v647, %v1009
      %v1020 = vmul.f32 %v648, %v1013
      %1027 = vrot.lane.b32.xlu0 %v1015, 116
      %v1028 = vpop.permute.xlu0 %1027
      %1029 = vrot.lane.b32.xlu0 %v1016, 116
      %v1030 = vpop.permute.xlu0 %1029
      %1031 = vrot.lane.b32.xlu0 %v1017, 116
      %v1032 = vpop.permute.xlu0 %1031
      %1033 = vrot.lane.b32.xlu0 %v1018, 116
      %v1034 = vpop.permute.xlu0 %1033
      %1035 = vrot.lane.b32.xlu0 %v1019, 116
      %v1036 = vpop.permute.xlu0 %1035
      %1037 = vrot.lane.b32.xlu0 %v1020, 116
      %v1038 = vpop.permute.xlu0 %1037
      %v1045 = vadd.f32 %v985, %v1028
      %v1046 = vadd.f32 %v986, %v1030
      %v1047 = vadd.f32 %v987, %v1032
      %v1048 = vadd.f32 %v988, %v1034
      %v1049 = vadd.f32 %v989, %v1036
      %v1050 = vadd.f32 %v990, %v1038
      %1051 = vset.pattern.permute.xlu0 7
      %1052 = vperm.xlu0 %1051, %v649
      %v1053 = vpop.permute.xlu0 %1052
      %1055 = vset.pattern.permute.xlu0 7
      %1056 = vperm.xlu0 %1055, %v650
      %v1057 = vpop.permute.xlu0 %1056
      %1059 = vset.pattern.permute.xlu0 7
      %1060 = vperm.xlu0 %1059, %v651
      %v1061 = vpop.permute.xlu0 %1060
      %1063 = vset.pattern.permute.xlu0 7
      %1064 = vperm.xlu0 %1063, %v652
      %v1065 = vpop.permute.xlu0 %1064
      %1067 = vset.pattern.permute.xlu0 7
      %1068 = vperm.xlu0 %1067, %v653
      %v1069 = vpop.permute.xlu0 %1068
      %1071 = vset.pattern.permute.xlu0 7
      %1072 = vperm.xlu0 %1071, %v654
      %v1073 = vpop.permute.xlu0 %1072
      %v1075 = vmul.f32 %v643, %v1053
      %v1076 = vmul.f32 %v644, %v1057
      %v1077 = vmul.f32 %v645, %v1061
      %v1078 = vmul.f32 %v646, %v1065
      %v1079 = vmul.f32 %v647, %v1069
      %v1080 = vmul.f32 %v648, %v1073
      %1087 = vrot.lane.b32.xlu0 %v1075, 115
      %v1088 = vpop.permute.xlu0 %1087
      %1089 = vrot.lane.b32.xlu0 %v1076, 115
      %v1090 = vpop.permute.xlu0 %1089
      %1091 = vrot.lane.b32.xlu0 %v1077, 115
      %v1092 = vpop.permute.xlu0 %1091
      %1093 = vrot.lane.b32.xlu0 %v1078, 115
      %v1094 = vpop.permute.xlu0 %1093
      %1095 = vrot.lane.b32.xlu0 %v1079, 115
      %v1096 = vpop.permute.xlu0 %1095
      %1097 = vrot.lane.b32.xlu0 %v1080, 115
      %v1098 = vpop.permute.xlu0 %1097
      %v1105 = vadd.f32 %v1045, %v1088
      %v1106 = vadd.f32 %v1046, %v1090
      %v1107 = vadd.f32 %v1047, %v1092
      %v1108 = vadd.f32 %v1048, %v1094
      %v1109 = vadd.f32 %v1049, %v1096
      %v1110 = vadd.f32 %v1050, %v1098
      %1111 = vset.pattern.permute.xlu0 8
      %1112 = vperm.xlu0 %1111, %v649
      %v1113 = vpop.permute.xlu0 %1112
      %1115 = vset.pattern.permute.xlu0 8
      %1116 = vperm.xlu0 %1115, %v650
      %v1117 = vpop.permute.xlu0 %1116
      %1119 = vset.pattern.permute.xlu0 8
      %1120 = vperm.xlu0 %1119, %v651
      %v1121 = vpop.permute.xlu0 %1120
      %1123 = vset.pattern.permute.xlu0 8
      %1124 = vperm.xlu0 %1123, %v652
      %v1125 = vpop.permute.xlu0 %1124
      %1127 = vset.pattern.permute.xlu0 8
      %1128 = vperm.xlu0 %1127, %v653
      %v1129 = vpop.permute.xlu0 %1128
      %1131 = vset.pattern.permute.xlu0 8
      %1132 = vperm.xlu0 %1131, %v654
      %v1133 = vpop.permute.xlu0 %1132
      %v1135 = vmul.f32 %v643, %v1113
      %v1136 = vmul.f32 %v644, %v1117
      %v1137 = vmul.f32 %v645, %v1121
      %v1138 = vmul.f32 %v646, %v1125
      %v1139 = vmul.f32 %v647, %v1129
      %v1140 = vmul.f32 %v648, %v1133
      %1147 = vrot.lane.b32.xlu0 %v1135, 114
      %v1148 = vpop.permute.xlu0 %1147
      %1149 = vrot.lane.b32.xlu0 %v1136, 114
      %v1150 = vpop.permute.xlu0 %1149
      %1151 = vrot.lane.b32.xlu0 %v1137, 114
      %v1152 = vpop.permute.xlu0 %1151
      %1153 = vrot.lane.b32.xlu0 %v1138, 114
      %v1154 = vpop.permute.xlu0 %1153
      %1155 = vrot.lane.b32.xlu0 %v1139, 114
      %v1156 = vpop.permute.xlu0 %1155
      %1157 = vrot.lane.b32.xlu0 %v1140, 114
      %v1158 = vpop.permute.xlu0 %1157
      %v1165 = vadd.f32 %v1105, %v1148
      %v1166 = vadd.f32 %v1106, %v1150
      %v1167 = vadd.f32 %v1107, %v1152
      %v1168 = vadd.f32 %v1108, %v1154
      %v1169 = vadd.f32 %v1109, %v1156
      %v1170 = vadd.f32 %v1110, %v1158
      %v1171 = vld [vmem:[%s3] sm:$0xff]
      %v1172 = vld [vmem:[%s3 + $0x8] sm:$0xff]
      %v1173 = vld [vmem:[%s3 + $0x10] sm:$0xff]
      %v1174 = vld [vmem:[%s3 + $0x18] sm:$0xff]
      %v1175 = vld [vmem:[%s3 + $0x20] sm:$0xff]
      %v1176 = vld [vmem:[%s3 + $0x28] sm:$0xff]
      %1178 = vset.pattern.permute.xlu0 0
      %1179 = vperm.xlu0 %1178, %v1171
      %v1180 = vpop.permute.xlu0 %1179
      %1183 = vset.pattern.permute.xlu0 0
      %1184 = vperm.xlu0 %1183, %v1172
      %v1185 = vpop.permute.xlu0 %1184
      %1188 = vset.pattern.permute.xlu0 0
      %1189 = vperm.xlu0 %1188, %v1173
      %v1190 = vpop.permute.xlu0 %1189
      %1193 = vset.pattern.permute.xlu0 0
      %1194 = vperm.xlu0 %1193, %v1174
      %v1195 = vpop.permute.xlu0 %1194
      %1198 = vset.pattern.permute.xlu0 0
      %1199 = vperm.xlu0 %1198, %v1175
      %v1200 = vpop.permute.xlu0 %1199
      %1203 = vset.pattern.permute.xlu0 0
      %1204 = vperm.xlu0 %1203, %v1176
      %v1205 = vpop.permute.xlu0 %1204
      %v1207 = vadd.f32 %v1165, %v1180
      %v1208 = vadd.f32 %v1166, %v1185
      %v1209 = vadd.f32 %v1167, %v1190
      %v1210 = vadd.f32 %v1168, %v1195
      %v1211 = vadd.f32 %v1169, %v1200
      %v1212 = vadd.f32 %v1170, %v1205
      %v1213 = vmax.f32 %v1207, 0.0
      %v1214 = vmax.f32 %v1208, 0.0
      %v1215 = vmax.f32 %v1209, 0.0
      %v1216 = vmax.f32 %v1210, 0.0
      %v1217 = vmax.f32 %v1211, 0.0
      %v1218 = vmax.f32 %v1212, 0.0
      %1225 = vrot.lane.b32.xlu0 %v1213, 126
      %v1226 = vpop.permute.xlu0 %1225
      %1227 = vrot.lane.b32.xlu0 %v1214, 126
      %v1228 = vpop.permute.xlu0 %1227
      %1229 = vrot.lane.b32.xlu0 %v1215, 126
      %v1230 = vpop.permute.xlu0 %1229
      %1231 = vrot.lane.b32.xlu0 %v1216, 126
      %v1232 = vpop.permute.xlu0 %1231
      %1233 = vrot.lane.b32.xlu0 %v1217, 126
      %v1234 = vpop.permute.xlu0 %1233
      %1235 = vrot.lane.b32.xlu0 %v1218, 126
      %v1236 = vpop.permute.xlu0 %1235
      %1243 = vrot.lane.b32.xlu0 %v1213, 124
      %v1244 = vpop.permute.xlu0 %1243
      %1245 = vrot.lane.b32.xlu0 %v1214, 124
      %v1246 = vpop.permute.xlu0 %1245
      %1247 = vrot.lane.b32.xlu0 %v1215, 124
      %v1248 = vpop.permute.xlu0 %1247
      %1249 = vrot.lane.b32.xlu0 %v1216, 124
      %v1250 = vpop.permute.xlu0 %1249
      %1251 = vrot.lane.b32.xlu0 %v1217, 124
      %v1252 = vpop.permute.xlu0 %1251
      %1253 = vrot.lane.b32.xlu0 %v1218, 124
      %v1254 = vpop.permute.xlu0 %1253
      %1261 = vrot.lane.b32.xlu0 %v1213, 122
      %v1262 = vpop.permute.xlu0 %1261
      %1263 = vrot.lane.b32.xlu0 %v1214, 122
      %v1264 = vpop.permute.xlu0 %1263
      %1265 = vrot.lane.b32.xlu0 %v1215, 122
      %v1266 = vpop.permute.xlu0 %1265
      %1267 = vrot.lane.b32.xlu0 %v1216, 122
      %v1268 = vpop.permute.xlu0 %1267
      %1269 = vrot.lane.b32.xlu0 %v1217, 122
      %v1270 = vpop.permute.xlu0 %1269
      %1271 = vrot.lane.b32.xlu0 %v1218, 122
      %v1272 = vpop.permute.xlu0 %1271
      %v1279 = vsel %vm524, %v1213, %v1226
      %v1280 = vsel %vm524, %v1214, %v1228
      %v1281 = vsel %vm524, %v1215, %v1230
      %v1282 = vsel %vm524, %v1216, %v1232
      %v1283 = vsel %vm524, %v1217, %v1234
      %v1284 = vsel %vm524, %v1218, %v1236
      %vm1285 = vcmask 64512
      %v1286 = vsel %vm1285, %v1279, %v1244
      %v1287 = vsel %vm1285, %v1280, %v1246
      %v1288 = vsel %vm1285, %v1281, %v1248
      %v1289 = vsel %vm1285, %v1282, %v1250
      %v1290 = vsel %vm1285, %v1283, %v1252
      %v1291 = vsel %vm1285, %v1284, %v1254
      %v1292 = vsel %vm627, %v1286, %v1262
      %v1293 = vsel %vm627, %v1287, %v1264
      %v1294 = vsel %vm627, %v1288, %v1266
      %v1295 = vsel %vm627, %v1289, %v1268
      %v1296 = vsel %vm627, %v1290, %v1270
      %v1297 = vsel %vm627, %v1291, %v1272
      %v1298 = vld [vmem:[%s4] sm:$0xf]
      %v1299 = vld [vmem:[%s4 + $0x4] sm:$0xf]
      %v1300 = vpack.c.bf16 %v1293, %v1292
      %v1301 = vpack.c.bf16 %v1295, %v1294
      %v1302 = vpack.c.bf16 %v1297, %v1296
      %v1303 = vld [vmem:[%s5] sm:$0xff]
      %v1304 = vld [vmem:[%s5 + $0x8] sm:$0xff]
      %1306 = vset.pattern.permute.xlu0 0
      %1307 = vperm.xlu0 %1306, %v1303
      %v1308 = vpop.permute.xlu0 %1307
      %1311 = vset.pattern.permute.xlu0 0
      %1312 = vperm.xlu0 %1311, %v1304
      %v1313 = vpop.permute.xlu0 %1312
      %v1317 = vunpack.c.l.b16 %v1298
      %v1318 = vunpack.c.l.b16 %v1299
      %v1319 = vpack.c.b16 %v1318, %v1317
      %vm1320 = vcmask 392192
      %v1322 = vsel %vm1320, %v1319, 0
      %1324 = vmatprep.subr.bf16.mxu0 0
      %1325 = vmatpush1.bf16.msra.mxu0 %v1300
      %1326 = vmatprep.subr.bf16.mxu0 0
      %1327 = vmatpush1.bf16.msra.mxu0 %v1301
      %1328 = vmatprep.subr.bf16.mxu0 0
      %1329 = vmatpush1.bf16.msra.mxu0 %v1302
      %1330 = vmatprep.subr.bf16.mxu0 0
      %1331 = vmatpush1.bf16.msra.mxu0 0
      %1332 = vmatprep.subr.bf16.mxu0 0
      %1333 = vmatpush1.bf16.msra.mxu0 0
      %1334 = vmatprep.subr.bf16.mxu0 0
      %1335 = vmatpush1.bf16.msra.mxu0 0
      %1336 = vmatprep.subr.bf16.mxu0 0
      %1337 = vmatpush1.bf16.msra.mxu0 0
      %1338 = vmatprep.subr.bf16.mxu0 0
      %1339 = vmatpush1.bf16.msra.mxu0 0
      %1340 = vmatprep.subr.bf16.mxu0 0
      %1341 = vmatpush1.bf16.msra.mxu0 0
      %1342 = vmatprep.subr.bf16.mxu0 0
      %1343 = vmatpush1.bf16.msra.mxu0 0
      %1344 = vmatprep.subr.bf16.mxu0 0
      %1345 = vmatpush1.bf16.msra.mxu0 0
      %1346 = vmatprep.subr.bf16.mxu0 0
      %1347 = vmatpush1.bf16.msra.mxu0 0
      %1348 = vmatprep.subr.bf16.mxu0 0
      %1349 = vmatpush1.bf16.msra.mxu0 0
      %1350 = vmatprep.subr.bf16.mxu0 0
      %1351 = vmatpush1.bf16.msra.mxu0 0
      %1352 = vmatprep.subr.bf16.mxu0 0
      %1353 = vmatpush1.bf16.msra.mxu0 0
      %1354 = vmatprep.subr.bf16.mxu0 0
      %1355 = vmatpush1.bf16.msra.mxu0 0
      %1356 = vmatprep.mubr.bf16.mxu0 0
      %1357 = vmatmul.mubr.bf16.gmra.mrb[0].mxu0 %v1322
      %v1358 = vpop.f32.mrb[0].mxu0
      %v1359 = vadd.f32 %v1308, %v1358
      %v1360 = vpop.f32.mrb[0].mxu0
      %v1361 = vpop.f32.mrb[0].mxu0
      %v1362 = vadd.f32 %v1313, %v1361
      %v1363 = vpop.f32.mrb[0].mxu0
      %1364 = vdwg.mxu0
      %v1365 = vmax.f32 %v1359, 0.0
      %v1366 = vmax.f32 %v1362, 0.0
      %vm1367 = vcmask 130048
      %1368 = vst.msk [vmem:[%s458] sm:$0xff] %vm1367, %v1365
      %1369 = vst.msk [vmem:[%s458 + $0x8] sm:$0xff] %vm1367, %v1366
      %1372 = vrot.lane.b32.xlu0 %v1365, 1
      %v1373 = vpop.permute.xlu0 %1372
      %1374 = vrot.lane.b32.xlu0 %v1366, 1
      %v1375 = vpop.permute.xlu0 %1374
      %1378 = vrot.lane.b32.xlu0 %v1365, 2
      %v1379 = vpop.permute.xlu0 %1378
      %1380 = vrot.lane.b32.xlu0 %v1366, 2
      %v1381 = vpop.permute.xlu0 %1380
      %1384 = vrot.lane.b32.xlu0 %v1365, 3
      %v1385 = vpop.permute.xlu0 %1384
      %1386 = vrot.lane.b32.xlu0 %v1366, 3
      %v1387 = vpop.permute.xlu0 %1386
      %1390 = vrot.lane.b32.xlu0 %v1365, 4
      %v1391 = vpop.permute.xlu0 %1390
      %1392 = vrot.lane.b32.xlu0 %v1366, 4
      %v1393 = vpop.permute.xlu0 %1392
      %1396 = vrot.lane.b32.xlu0 %v1365, 5
      %v1397 = vpop.permute.xlu0 %1396
      %1398 = vrot.lane.b32.xlu0 %v1366, 5
      %v1399 = vpop.permute.xlu0 %1398
      %v1402 = vsel %vm509, 0.0, %v1373
      %v1403 = vsel %vm509, 0.0, %v1375
      %v1404 = vsel %vm514, %v1402, %v1379
      %v1405 = vsel %vm514, %v1403, %v1381
      %v1406 = vsel %vm519, %v1404, %v1379
      %v1407 = vsel %vm519, %v1405, %v1381
      %v1408 = vsel %vm524, %v1406, %v1385
      %v1409 = vsel %vm524, %v1407, %v1387
      %v1410 = vsel %vm529, %v1408, %v1385
      %v1411 = vsel %vm529, %v1409, %v1387
      %v1412 = vsel %vm622, %v1410, %v1391
      %v1413 = vsel %vm622, %v1411, %v1393
      %vm1414 = vcmask 56320
      %v1415 = vsel %vm1414, %v1412, %v1391
      %v1416 = vsel %vm1414, %v1413, %v1393
      %v1417 = vsel %vm1285, %v1415, %v1397
      %v1418 = vsel %vm1285, %v1416, %v1399
      %vm1419 = vcmask 72704
      %v1420 = vsel %vm1419, %v1417, 0.0
      %v1421 = vsel %vm1419, %v1418, 0.0
      %1422 = vrot.lane.b32.xlu0 %v1365, 125
      %v1423 = vpop.permute.xlu0 %1422
      %1424 = vrot.lane.b32.xlu0 %v1366, 125
      %v1425 = vpop.permute.xlu0 %1424
      %1428 = vrot.lane.b32.xlu0 %v1365, 126
      %v1429 = vpop.permute.xlu0 %1428
      %1430 = vrot.lane.b32.xlu0 %v1366, 126
      %v1431 = vpop.permute.xlu0 %1430
      %1434 = vrot.lane.b32.xlu0 %v1365, 127
      %v1435 = vpop.permute.xlu0 %1434
      %1436 = vrot.lane.b32.xlu0 %v1366, 127
      %v1437 = vpop.permute.xlu0 %1436
      %v1440 = vsel %vm509, 0.0, %v1423
      %v1441 = vsel %vm509, 0.0, %v1425
      %v1442 = vsel %vm514, %v1440, %v1429
      %v1443 = vsel %vm514, %v1441, %v1431
      %v1444 = vsel %vm519, %v1442, %v1429
      %v1445 = vsel %vm519, %v1443, %v1431
      %v1446 = vsel %vm524, %v1444, %v1435
      %v1447 = vsel %vm524, %v1445, %v1437
      %v1448 = vsel %vm529, %v1446, %v1435
      %v1449 = vsel %vm529, %v1447, %v1437
      %v1450 = vsel %vm622, %v1448, %v1365
      %v1451 = vsel %vm622, %v1449, %v1366
      %v1452 = vsel %vm1414, %v1450, %v1365
      %v1453 = vsel %vm1414, %v1451, %v1366
      %v1454 = vsel %vm1285, %v1452, %v1373
      %v1455 = vsel %vm1285, %v1453, %v1375
      %v1456 = vsel %vm1419, %v1454, 0.0
      %v1457 = vsel %vm1419, %v1455, 0.0
      %1458 = vrot.lane.b32.xlu0 %v1365, 121
      %v1459 = vpop.permute.xlu0 %1458
      %1460 = vrot.lane.b32.xlu0 %v1366, 121
      %v1461 = vpop.permute.xlu0 %1460
      %1464 = vrot.lane.b32.xlu0 %v1365, 122
      %v1465 = vpop.permute.xlu0 %1464
      %1466 = vrot.lane.b32.xlu0 %v1366, 122
      %v1467 = vpop.permute.xlu0 %1466
      %1470 = vrot.lane.b32.xlu0 %v1365, 123
      %v1471 = vpop.permute.xlu0 %1470
      %1472 = vrot.lane.b32.xlu0 %v1366, 123
      %v1473 = vpop.permute.xlu0 %1472
      %1476 = vrot.lane.b32.xlu0 %v1365, 124
      %v1477 = vpop.permute.xlu0 %1476
      %1478 = vrot.lane.b32.xlu0 %v1366, 124
      %v1479 = vpop.permute.xlu0 %1478
      %v1482 = vsel %vm509, 0.0, %v1459
      %v1483 = vsel %vm509, 0.0, %v1461
      %v1484 = vsel %vm514, %v1482, %v1465
      %v1485 = vsel %vm514, %v1483, %v1467
      %v1486 = vsel %vm519, %v1484, %v1465
      %v1487 = vsel %vm519, %v1485, %v1467
      %v1488 = vsel %vm524, %v1486, %v1471
      %v1489 = vsel %vm524, %v1487, %v1473
      %v1490 = vsel %vm529, %v1488, %v1471
      %v1491 = vsel %vm529, %v1489, %v1473
      %v1492 = vsel %vm622, %v1490, %v1477
      %v1493 = vsel %vm622, %v1491, %v1479
      %v1494 = vsel %vm1414, %v1492, %v1477
      %v1495 = vsel %vm1414, %v1493, %v1479
      %v1496 = vsel %vm1285, %v1494, %v1423
      %v1497 = vsel %vm1285, %v1495, %v1425
      %v1498 = vsel %vm1419, %v1496, 0.0
      %v1499 = vsel %vm1419, %v1497, 0.0
      %1500 = vrot.lane.b32.xlu0 %v1365, 117
      %v1501 = vpop.permute.xlu0 %1500
      %1502 = vrot.lane.b32.xlu0 %v1366, 117
      %v1503 = vpop.permute.xlu0 %1502
      %1506 = vrot.lane.b32.xlu0 %v1365, 118
      %v1507 = vpop.permute.xlu0 %1506
      %1508 = vrot.lane.b32.xlu0 %v1366, 118
      %v1509 = vpop.permute.xlu0 %1508
      %1512 = vrot.lane.b32.xlu0 %v1365, 119
      %v1513 = vpop.permute.xlu0 %1512
      %1514 = vrot.lane.b32.xlu0 %v1366, 119
      %v1515 = vpop.permute.xlu0 %1514
      %1518 = vrot.lane.b32.xlu0 %v1365, 120
      %v1519 = vpop.permute.xlu0 %1518
      %1520 = vrot.lane.b32.xlu0 %v1366, 120
      %v1521 = vpop.permute.xlu0 %1520
      %v1524 = vsel %vm509, 0.0, %v1501
      %v1525 = vsel %vm509, 0.0, %v1503
      %v1526 = vsel %vm514, %v1524, %v1507
      %v1527 = vsel %vm514, %v1525, %v1509
      %v1528 = vsel %vm519, %v1526, %v1507
      %v1529 = vsel %vm519, %v1527, %v1509
      %v1530 = vsel %vm524, %v1528, %v1513
      %v1531 = vsel %vm524, %v1529, %v1515
      %v1532 = vsel %vm529, %v1530, %v1513
      %v1533 = vsel %vm529, %v1531, %v1515
      %v1534 = vsel %vm622, %v1532, %v1519
      %v1535 = vsel %vm622, %v1533, %v1521
      %v1536 = vsel %vm1414, %v1534, %v1519
      %v1537 = vsel %vm1414, %v1535, %v1521
      %v1538 = vsel %vm1285, %v1536, %v1459
      %v1539 = vsel %vm1285, %v1537, %v1461
      %v1540 = vsel %vm1419, %v1538, 0.0
      %v1541 = vsel %vm1419, %v1539, 0.0
      %1544 = vrot.lane.b32.xlu0 %v1420, 10
      %v1545 = vpop.permute.xlu0 %1544
      %1546 = vrot.lane.b32.xlu0 %v1421, 10
      %v1547 = vpop.permute.xlu0 %1546
      %1550 = vrot.lane.b32.xlu0 %v1420, 20
      %v1551 = vpop.permute.xlu0 %1550
      %1552 = vrot.lane.b32.xlu0 %v1421, 20
      %v1553 = vpop.permute.xlu0 %1552
      %1558 = vrot.lane.b32.xlu0 %v1456, 30
      %v1559 = vpop.permute.xlu0 %1558
      %1560 = vrot.lane.b32.xlu0 %v1457, 30
      %v1561 = vpop.permute.xlu0 %1560
      %1564 = vrot.lane.b32.xlu0 %v1456, 40
      %v1565 = vpop.permute.xlu0 %1564
      %1566 = vrot.lane.b32.xlu0 %v1457, 40
      %v1567 = vpop.permute.xlu0 %1566
      %1572 = vrot.lane.b32.xlu0 %v1498, 50
      %v1573 = vpop.permute.xlu0 %1572
      %1574 = vrot.lane.b32.xlu0 %v1499, 50
      %v1575 = vpop.permute.xlu0 %1574
      %1578 = vrot.lane.b32.xlu0 %v1498, 60
      %v1579 = vpop.permute.xlu0 %1578
      %1580 = vrot.lane.b32.xlu0 %v1499, 60
      %v1581 = vpop.permute.xlu0 %1580
      %1586 = vrot.lane.b32.xlu0 %v1540, 70
      %v1587 = vpop.permute.xlu0 %1586
      %1588 = vrot.lane.b32.xlu0 %v1541, 70
      %v1589 = vpop.permute.xlu0 %1588
      %1592 = vrot.lane.b32.xlu0 %v1540, 80
      %v1593 = vpop.permute.xlu0 %1592
      %1594 = vrot.lane.b32.xlu0 %v1541, 80
      %v1595 = vpop.permute.xlu0 %1594
      %vm1598 = vcmask 80896
      %v1599 = vsel %vm1598, 0.0, %v1545
      %v1600 = vsel %vm1598, 0.0, %v1547
      %vm1601 = vcmask 162816
      %v1602 = vsel %vm1601, %v1599, %v1551
      %v1603 = vsel %vm1601, %v1600, %v1553
      %v1604 = vsel %vm642, %v1602, %v1559
      %v1605 = vsel %vm642, %v1603, %v1561
      %vm1606 = vcmask 326656
      %v1607 = vsel %vm1606, %v1604, %v1565
      %v1608 = vsel %vm1606, %v1605, %v1567
      %vm1609 = vcmask 408576
      %v1610 = vsel %vm1609, %v1607, %v1573
      %v1611 = vsel %vm1609, %v1608, %v1575
      %vm1612 = vcmask 490496
      %v1613 = vsel %vm1612, %v1610, %v1579
      %v1614 = vsel %vm1612, %v1611, %v1581
      %vm1615 = vcmask 572416
      %v1616 = vsel %vm1615, %v1613, %v1587
      %v1617 = vsel %vm1615, %v1614, %v1589
      %vm1618 = vcmask 654336
      %v1619 = vsel %vm1618, %v1616, %v1593
      %v1620 = vsel %vm1618, %v1617, %v1595
      %vm1621 = vcmask 736256
      %v1622 = vsel %vm1621, %v1619, 0.0
      %v1623 = vsel %vm1621, %v1620, 0.0
      %v1624 = vld [vmem:[%s453] sm:$0xff]
      %v1625 = vld [vmem:[%s7] sm:$0xff]
      %v1626 = vld [vmem:[%s7 + $0x8] sm:$0xff]
      %v1627 = vld [vmem:[%s7 + $0x10] sm:$0xff]
      %1629 = vset.pattern.permute.xlu0 0
      %1630 = vperm.xlu0 %1629, %v1625
      %v1631 = vpop.permute.xlu0 %1630
      %1634 = vset.pattern.permute.xlu0 0
      %1635 = vperm.xlu0 %1634, %v1626
      %v1636 = vpop.permute.xlu0 %1635
      %1639 = vset.pattern.permute.xlu0 0
      %1640 = vperm.xlu0 %1639, %v1627
      %v1641 = vpop.permute.xlu0 %1640
      %v1643 = vmul.f32 %v1622, %v1631
      %v1644 = vmul.f32 %v1623, %v1636
      %v1645 = vmul.f32 %v1624, %v1641
      %1646 = vset.pattern.permute.xlu0 1
      %1647 = vperm.xlu0 %1646, %v1625
      %v1648 = vpop.permute.xlu0 %1647
      %1650 = vset.pattern.permute.xlu0 1
      %1651 = vperm.xlu0 %1650, %v1626
      %v1652 = vpop.permute.xlu0 %1651
      %1654 = vset.pattern.permute.xlu0 1
      %1655 = vperm.xlu0 %1654, %v1627
      %v1656 = vpop.permute.xlu0 %1655
      %v1658 = vmul.f32 %v1622, %v1648
      %v1659 = vmul.f32 %v1623, %v1652
      %v1660 = vmul.f32 %v1624, %v1656
      %1664 = vrot.lane.b32.xlu0 %v1658, 127
      %v1665 = vpop.permute.xlu0 %1664
      %1666 = vrot.lane.b32.xlu0 %v1659, 127
      %v1667 = vpop.permute.xlu0 %1666
      %1668 = vrot.lane.b32.xlu0 %v1660, 127
      %v1669 = vpop.permute.xlu0 %1668
      %v1673 = vadd.f32 %v1643, %v1665
      %v1674 = vadd.f32 %v1644, %v1667
      %v1675 = vadd.f32 %v1645, %v1669
      %1676 = vset.pattern.permute.xlu0 2
      %1677 = vperm.xlu0 %1676, %v1625
      %v1678 = vpop.permute.xlu0 %1677
      %1680 = vset.pattern.permute.xlu0 2
      %1681 = vperm.xlu0 %1680, %v1626
      %v1682 = vpop.permute.xlu0 %1681
      %1684 = vset.pattern.permute.xlu0 2
      %1685 = vperm.xlu0 %1684, %v1627
      %v1686 = vpop.permute.xlu0 %1685
      %v1688 = vmul.f32 %v1622, %v1678
      %v1689 = vmul.f32 %v1623, %v1682
      %v1690 = vmul.f32 %v1624, %v1686
      %1694 = vrot.lane.b32.xlu0 %v1688, 126
      %v1695 = vpop.permute.xlu0 %1694
      %1696 = vrot.lane.b32.xlu0 %v1689, 126
      %v1697 = vpop.permute.xlu0 %1696
      %1698 = vrot.lane.b32.xlu0 %v1690, 126
      %v1699 = vpop.permute.xlu0 %1698
      %v1703 = vadd.f32 %v1673, %v1695
      %v1704 = vadd.f32 %v1674, %v1697
      %v1705 = vadd.f32 %v1675, %v1699
      %1706 = vset.pattern.permute.xlu0 3
      %1707 = vperm.xlu0 %1706, %v1625
      %v1708 = vpop.permute.xlu0 %1707
      %1710 = vset.pattern.permute.xlu0 3
      %1711 = vperm.xlu0 %1710, %v1626
      %v1712 = vpop.permute.xlu0 %1711
      %1714 = vset.pattern.permute.xlu0 3
      %1715 = vperm.xlu0 %1714, %v1627
      %v1716 = vpop.permute.xlu0 %1715
      %v1718 = vmul.f32 %v1622, %v1708
      %v1719 = vmul.f32 %v1623, %v1712
      %v1720 = vmul.f32 %v1624, %v1716
      %1724 = vrot.lane.b32.xlu0 %v1718, 118
      %v1725 = vpop.permute.xlu0 %1724
      %1726 = vrot.lane.b32.xlu0 %v1719, 118
      %v1727 = vpop.permute.xlu0 %1726
      %1728 = vrot.lane.b32.xlu0 %v1720, 118
      %v1729 = vpop.permute.xlu0 %1728
      %v1733 = vadd.f32 %v1703, %v1725
      %v1734 = vadd.f32 %v1704, %v1727
      %v1735 = vadd.f32 %v1705, %v1729
      %1736 = vset.pattern.permute.xlu0 4
      %1737 = vperm.xlu0 %1736, %v1625
      %v1738 = vpop.permute.xlu0 %1737
      %1740 = vset.pattern.permute.xlu0 4
      %1741 = vperm.xlu0 %1740, %v1626
      %v1742 = vpop.permute.xlu0 %1741
      %1744 = vset.pattern.permute.xlu0 4
      %1745 = vperm.xlu0 %1744, %v1627
      %v1746 = vpop.permute.xlu0 %1745
      %v1748 = vmul.f32 %v1622, %v1738
      %v1749 = vmul.f32 %v1623, %v1742
      %v1750 = vmul.f32 %v1624, %v1746
      %1754 = vrot.lane.b32.xlu0 %v1748, 117
      %v1755 = vpop.permute.xlu0 %1754
      %1756 = vrot.lane.b32.xlu0 %v1749, 117
      %v1757 = vpop.permute.xlu0 %1756
      %1758 = vrot.lane.b32.xlu0 %v1750, 117
      %v1759 = vpop.permute.xlu0 %1758
      %v1763 = vadd.f32 %v1733, %v1755
      %v1764 = vadd.f32 %v1734, %v1757
      %v1765 = vadd.f32 %v1735, %v1759
      %1766 = vset.pattern.permute.xlu0 5
      %1767 = vperm.xlu0 %1766, %v1625
      %v1768 = vpop.permute.xlu0 %1767
      %1770 = vset.pattern.permute.xlu0 5
      %1771 = vperm.xlu0 %1770, %v1626
      %v1772 = vpop.permute.xlu0 %1771
      %1774 = vset.pattern.permute.xlu0 5
      %1775 = vperm.xlu0 %1774, %v1627
      %v1776 = vpop.permute.xlu0 %1775
      %v1778 = vmul.f32 %v1622, %v1768
      %v1779 = vmul.f32 %v1623, %v1772
      %v1780 = vmul.f32 %v1624, %v1776
      %1784 = vrot.lane.b32.xlu0 %v1778, 116
      %v1785 = vpop.permute.xlu0 %1784
      %1786 = vrot.lane.b32.xlu0 %v1779, 116
      %v1787 = vpop.permute.xlu0 %1786
      %1788 = vrot.lane.b32.xlu0 %v1780, 116
      %v1789 = vpop.permute.xlu0 %1788
      %v1793 = vadd.f32 %v1763, %v1785
      %v1794 = vadd.f32 %v1764, %v1787
      %v1795 = vadd.f32 %v1765, %v1789
      %1796 = vset.pattern.permute.xlu0 6
      %1797 = vperm.xlu0 %1796, %v1625
      %v1798 = vpop.permute.xlu0 %1797
      %1800 = vset.pattern.permute.xlu0 6
      %1801 = vperm.xlu0 %1800, %v1626
      %v1802 = vpop.permute.xlu0 %1801
      %1804 = vset.pattern.permute.xlu0 6
      %1805 = vperm.xlu0 %1804, %v1627
      %v1806 = vpop.permute.xlu0 %1805
      %v1808 = vmul.f32 %v1622, %v1798
      %v1809 = vmul.f32 %v1623, %v1802
      %v1810 = vmul.f32 %v1624, %v1806
      %1814 = vrot.lane.b32.xlu0 %v1808, 108
      %v1815 = vpop.permute.xlu0 %1814
      %1816 = vrot.lane.b32.xlu0 %v1809, 108
      %v1817 = vpop.permute.xlu0 %1816
      %1818 = vrot.lane.b32.xlu0 %v1810, 108
      %v1819 = vpop.permute.xlu0 %1818
      %v1823 = vadd.f32 %v1793, %v1815
      %v1824 = vadd.f32 %v1794, %v1817
      %v1825 = vadd.f32 %v1795, %v1819
      %1826 = vset.pattern.permute.xlu0 7
      %1827 = vperm.xlu0 %1826, %v1625
      %v1828 = vpop.permute.xlu0 %1827
      %1830 = vset.pattern.permute.xlu0 7
      %1831 = vperm.xlu0 %1830, %v1626
      %v1832 = vpop.permute.xlu0 %1831
      %1834 = vset.pattern.permute.xlu0 7
      %1835 = vperm.xlu0 %1834, %v1627
      %v1836 = vpop.permute.xlu0 %1835
      %v1838 = vmul.f32 %v1622, %v1828
      %v1839 = vmul.f32 %v1623, %v1832
      %v1840 = vmul.f32 %v1624, %v1836
      %1844 = vrot.lane.b32.xlu0 %v1838, 107
      %v1845 = vpop.permute.xlu0 %1844
      %1846 = vrot.lane.b32.xlu0 %v1839, 107
      %v1847 = vpop.permute.xlu0 %1846
      %1848 = vrot.lane.b32.xlu0 %v1840, 107
      %v1849 = vpop.permute.xlu0 %1848
      %v1853 = vadd.f32 %v1823, %v1845
      %v1854 = vadd.f32 %v1824, %v1847
      %v1855 = vadd.f32 %v1825, %v1849
      %1856 = vset.pattern.permute.xlu0 8
      %1857 = vperm.xlu0 %1856, %v1625
      %v1858 = vpop.permute.xlu0 %1857
      %1860 = vset.pattern.permute.xlu0 8
      %1861 = vperm.xlu0 %1860, %v1626
      %v1862 = vpop.permute.xlu0 %1861
      %1864 = vset.pattern.permute.xlu0 8
      %1865 = vperm.xlu0 %1864, %v1627
      %v1866 = vpop.permute.xlu0 %1865
      %v1868 = vmul.f32 %v1622, %v1858
      %v1869 = vmul.f32 %v1623, %v1862
      %v1870 = vmul.f32 %v1624, %v1866
      %1874 = vrot.lane.b32.xlu0 %v1868, 106
      %v1875 = vpop.permute.xlu0 %1874
      %1876 = vrot.lane.b32.xlu0 %v1869, 106
      %v1877 = vpop.permute.xlu0 %1876
      %1878 = vrot.lane.b32.xlu0 %v1870, 106
      %v1879 = vpop.permute.xlu0 %1878
      %v1883 = vadd.f32 %v1853, %v1875
      %v1884 = vadd.f32 %v1854, %v1877
      %v1885 = vadd.f32 %v1855, %v1879
      %v1886 = vld [vmem:[%s8] sm:$0xff]
      %v1887 = vld [vmem:[%s8 + $0x8] sm:$0xff]
      %v1888 = vld [vmem:[%s8 + $0x10] sm:$0xff]
      %1890 = vset.pattern.permute.xlu0 0
      %1891 = vperm.xlu0 %1890, %v1886
      %v1892 = vpop.permute.xlu0 %1891
      %1895 = vset.pattern.permute.xlu0 0
      %1896 = vperm.xlu0 %1895, %v1887
      %v1897 = vpop.permute.xlu0 %1896
      %1900 = vset.pattern.permute.xlu0 0
      %1901 = vperm.xlu0 %1900, %v1888
      %v1902 = vpop.permute.xlu0 %1901
      %v1904 = vadd.f32 %v1883, %v1892
      %v1905 = vadd.f32 %v1884, %v1897
      %v1906 = vadd.f32 %v1885, %v1902
      %v1907 = vmax.f32 %v1904, 0.0
      %v1908 = vmax.f32 %v1905, 0.0
      %v1909 = vmax.f32 %v1906, 0.0
      %1913 = vrot.lane.b32.xlu0 %v1907, 126
      %v1914 = vpop.permute.xlu0 %1913
      %1915 = vrot.lane.b32.xlu0 %v1908, 126
      %v1916 = vpop.permute.xlu0 %1915
      %1917 = vrot.lane.b32.xlu0 %v1909, 126
      %v1918 = vpop.permute.xlu0 %1917
      %1922 = vrot.lane.b32.xlu0 %v1907, 124
      %v1923 = vpop.permute.xlu0 %1922
      %1924 = vrot.lane.b32.xlu0 %v1908, 124
      %v1925 = vpop.permute.xlu0 %1924
      %1926 = vrot.lane.b32.xlu0 %v1909, 124
      %v1927 = vpop.permute.xlu0 %1926
      %1931 = vrot.lane.b32.xlu0 %v1907, 122
      %v1932 = vpop.permute.xlu0 %1931
      %1933 = vrot.lane.b32.xlu0 %v1908, 122
      %v1934 = vpop.permute.xlu0 %1933
      %1935 = vrot.lane.b32.xlu0 %v1909, 122
      %v1936 = vpop.permute.xlu0 %1935
      %1940 = vrot.lane.b32.xlu0 %v1907, 120
      %v1941 = vpop.permute.xlu0 %1940
      %1942 = vrot.lane.b32.xlu0 %v1908, 120
      %v1943 = vpop.permute.xlu0 %1942
      %1944 = vrot.lane.b32.xlu0 %v1909, 120
      %v1945 = vpop.permute.xlu0 %1944
      %1949 = vrot.lane.b32.xlu0 %v1907, 118
      %v1950 = vpop.permute.xlu0 %1949
      %1951 = vrot.lane.b32.xlu0 %v1908, 118
      %v1952 = vpop.permute.xlu0 %1951
      %1953 = vrot.lane.b32.xlu0 %v1909, 118
      %v1954 = vpop.permute.xlu0 %1953
      %1958 = vrot.lane.b32.xlu0 %v1907, 116
      %v1959 = vpop.permute.xlu0 %1958
      %1960 = vrot.lane.b32.xlu0 %v1908, 116
      %v1961 = vpop.permute.xlu0 %1960
      %1962 = vrot.lane.b32.xlu0 %v1909, 116
      %v1963 = vpop.permute.xlu0 %1962
      %1967 = vrot.lane.b32.xlu0 %v1907, 114
      %v1968 = vpop.permute.xlu0 %1967
      %1969 = vrot.lane.b32.xlu0 %v1908, 114
      %v1970 = vpop.permute.xlu0 %1969
      %1971 = vrot.lane.b32.xlu0 %v1909, 114
      %v1972 = vpop.permute.xlu0 %1971
      %v1976 = vsel %vm1285, %v1907, %v1914
      %v1977 = vsel %vm1285, %v1908, %v1916
      %v1978 = vsel %vm1285, %v1909, %v1918
      %v1979 = vsel %vm1367, %v1976, %v1923
      %v1980 = vsel %vm1367, %v1977, %v1925
      %v1981 = vsel %vm1367, %v1978, %v1927
      %v1982 = vsel %vm637, %v1979, %v1932
      %v1983 = vsel %vm637, %v1980, %v1934
      %v1984 = vsel %vm637, %v1981, %v1936
      %vm1985 = vcmask 261120
      %v1986 = vsel %vm1985, %v1982, %v1941
      %v1987 = vsel %vm1985, %v1983, %v1943
      %v1988 = vsel %vm1985, %v1984, %v1945
      %v1989 = vsel %vm1606, %v1986, %v1950
      %v1990 = vsel %vm1606, %v1987, %v1952
      %v1991 = vsel %vm1606, %v1988, %v1954
      %v1992 = vsel %vm1320, %v1989, %v1959
      %v1993 = vsel %vm1320, %v1990, %v1961
      %v1994 = vsel %vm1320, %v1991, %v1963
      %vm1995 = vcmask 457728
      %v1996 = vsel %vm1995, %v1992, %v1968
      %v1997 = vsel %vm1995, %v1993, %v1970
      %v1998 = vsel %vm1995, %v1994, %v1972
      %v1999 = vld [vmem:[%s9] sm:$0xf]
      %v2000 = vld [vmem:[%s9 + $0x4] sm:$0xf]
      %v2001 = vpack.c.bf16 %v1997, %v1996
      %v2002 = vpack.c.bf16 %v1998, %v1998
      %v2003 = vld [vmem:[%s10] sm:$0xff]
      %v2004 = vld [vmem:[%s10 + $0x8] sm:$0xff]
      %2006 = vset.pattern.permute.xlu0 0
      %2007 = vperm.xlu0 %2006, %v2003
      %v2008 = vpop.permute.xlu0 %2007
      %2011 = vset.pattern.permute.xlu0 0
      %2012 = vperm.xlu0 %2011, %v2004
      %v2013 = vpop.permute.xlu0 %2012
      %v2017 = vunpack.c.l.b16 %v1999
      %v2018 = vunpack.c.l.b16 %v2000
      %v2019 = vpack.c.b16 %v2018, %v2017
      %v2021 = vsel %vm637, %v2019, 0
      %vm2023 = vcmask 1043456
      %v2025 = vsel %vm2023, %v2002, 0
      %2027 = vmatprep.subr.bf16.mxu0 0
      %2028 = vmatpush1.bf16.msra.mxu0 %v2001
      %2029 = vmatprep.subr.bf16.mxu0 0
      %2030 = vmatpush1.bf16.msra.mxu0 %v2025
      %2031 = vmatprep.subr.bf16.mxu0 0
      %2032 = vmatpush1.bf16.msra.mxu0 0
      %2033 = vmatprep.subr.bf16.mxu0 0
      %2034 = vmatpush1.bf16.msra.mxu0 0
      %2035 = vmatprep.subr.bf16.mxu0 0
      %2036 = vmatpush1.bf16.msra.mxu0 0
      %2037 = vmatprep.subr.bf16.mxu0 0
      %2038 = vmatpush1.bf16.msra.mxu0 0
      %2039 = vmatprep.subr.bf16.mxu0 0
      %2040 = vmatpush1.bf16.msra.mxu0 0
      %2041 = vmatprep.subr.bf16.mxu0 0
      %2042 = vmatpush1.bf16.msra.mxu0 0
      %2043 = vmatprep.subr.bf16.mxu0 0
      %2044 = vmatpush1.bf16.msra.mxu0 0
      %2045 = vmatprep.subr.bf16.mxu0 0
      %2046 = vmatpush1.bf16.msra.mxu0 0
      %2047 = vmatprep.subr.bf16.mxu0 0
      %2048 = vmatpush1.bf16.msra.mxu0 0
      %2049 = vmatprep.subr.bf16.mxu0 0
      %2050 = vmatpush1.bf16.msra.mxu0 0
      %2051 = vmatprep.subr.bf16.mxu0 0
      %2052 = vmatpush1.bf16.msra.mxu0 0
      %2053 = vmatprep.subr.bf16.mxu0 0
      %2054 = vmatpush1.bf16.msra.mxu0 0
      %2055 = vmatprep.subr.bf16.mxu0 0
      %2056 = vmatpush1.bf16.msra.mxu0 0
      %2057 = vmatprep.subr.bf16.mxu0 0
      %2058 = vmatpush1.bf16.msra.mxu0 0
      %2059 = vmatprep.mubr.bf16.mxu0 0
      %2060 = vmatmul.mubr.bf16.gmra.mrb[0].mxu0 %v2021
      %v2061 = vpop.f32.mrb[0].mxu0
      %v2062 = vadd.f32 %v2008, %v2061
      %v2063 = vpop.f32.mrb[0].mxu0
      %v2064 = vpop.f32.mrb[0].mxu0
      %v2065 = vadd.f32 %v2013, %v2064
      %v2066 = vpop.f32.mrb[0].mxu0
      %2067 = vdwg.mxu0
      %v2068 = vmax.f32 %v2062, 0.0
      %v2069 = vmax.f32 %v2065, 0.0
      %vm2070 = vcmask 523264
      %2071 = vst.msk [vmem:[%s463] sm:$0xff] %vm2070, %v2068
      %2072 = vst.msk [vmem:[%s463 + $0x8] sm:$0xff] %vm2070, %v2069
      %p2073 = scmp.lt.s32.totalorder %s24, 1
      %s2074 = scalar_select %p2073, %s24, 1
      %s2075 = smul.addr %s2074, 2
      %s2076 = smul.addr %s2075, 8
      %s2077 = scalar_lea.vmem %s11, %s2076
      %p2078 = scmp.lt.s32.totalorder %s24, 1
      %s2079 = scalar_select %p2078, %s24, 1
      %s2080 = smul.addr %s2079, 2
      %s2081 = smul.addr %s2080, 8
      %s2082 = scalar_lea.vmem %s12, %s2081
      // Predicated region
      $region65: #{forward.1} parent=63 // pred_check
        %p2083 = pneg %p288
      $region66: #{forward.1} parent=63 // pred_check_branch
        %2085 = sbr.rel (%p2083) target = $region68
      $region67: #{forward.1} parent=63 // pred_region
        _
      $region68: #{forward.1} parent=63 // pred_fallthru
        _
      // Predicated region
      $region69: #{forward.1} parent=63 // pred_check
        %p2086 = pneg %p314
      $region70: #{forward.1} parent=63 // pred_check_branch
        %2088 = sbr.rel (%p2086) target = $region72
      $region71: #{forward.1} parent=63 // pred_region
        _
      $region72: #{forward.1} parent=63 // pred_fallthru
        _
    $region64: #{forward.1} parent=5 // pred_fallthru
      _
    %p2089 = scmp.le.s32.totalorder 2, %s19
    // Predicated region
    $region73: #{forward.1} parent=5 // pred_check
      %p2090 = pneg %p2089
    $region74: #{forward.1} parent=5 // pred_check_branch
      %2092 = sbr.rel (%p2090) target = $region76
    $region75: #{forward.1} parent=5 // pred_region
      %s2093 = ssub.s32 %s19, 2
      // Predicated region
      $region77: #{forward.1} parent=75 // pred_check
        %p2094 = pneg %p294
      $region78: #{forward.1} parent=75 // pred_check_branch
        %2096 = sbr.rel (%p2094) target = $region80
      $region79: #{forward.1} parent=75 // pred_region
        %p2097 = scmp.lt.s32.totalorder %s25, 1
        %s2098 = scalar_select %p2097, %s25, 1
        %s2099 = smul.addr %s2098, 2
        %s2100 = smul.addr %s2099, 8
        %s2101 = scalar_lea.vmem %s11, %s2100
      $region80: #{forward.1} parent=75 // pred_fallthru
        _
      // Predicated region
      $region81: #{forward.1} parent=75 // pred_check
        %p2102 = pneg %p320
      $region82: #{forward.1} parent=75 // pred_check_branch
        %2104 = sbr.rel (%p2102) target = $region84
      $region83: #{forward.1} parent=75 // pred_region
        %p2105 = scmp.lt.s32.totalorder %s25, 1
        %s2106 = scalar_select %p2105, %s25, 1
        %s2107 = smul.addr %s2106, 2
        %s2108 = smul.addr %s2107, 8
        %s2109 = scalar_lea.vmem %s12, %s2108
      $region84: #{forward.1} parent=75 // pred_fallthru
        _
    $region76: #{forward.1} parent=5 // pred_fallthru
      _
  $region6: #{forward.1} parent=0 // loop_footer
    %s23 = sadd.s32 1, %s19
  $region7: #{forward.1} parent=0 // loop_footer_branch
    %18 = sbr.rel target = $region3
  $region8: #{forward.1} parent=0 // loop_exit
    _

</llo_original>
